<compile_context>
chip_gen: v7x
topology: tpu7x:2x2x1
jax: 0.10.0
libtpu: 0.0.40
codegen_flags: <defaults>
</compile_context>

<pallas_src>
import math

import jax
import jax.numpy as jnp
from jax.experimental import pallas as pl
from jax.experimental.pallas import tpu as pltpu

EPSILON = 1e-06
LOG_STD_MAX = 2.0
LOG_STD_MIN = -20.0
NN_LAYER_1 = 400
NN_LAYER_2 = 300

# lane-padded hidden sizes (multiples of 128)
H1_PAD = 512
H2_PAD = 384

_LOG_SQRT_2PI = 0.5 * math.log(2.0 * math.pi)  # hoisted Python constant


def _policy_sac_kernel(noise_ref,            # SMEM (1,) scalar N(0,1) sample
                       s_ref,                # [TB, NI]        f32
                       w1_ref, b1_ref,       # [NI, 512] bf16, [1, 512] f32
                       w2_ref, b2_ref,       # [512, 384] bf16, [1, 384] f32
                       wh_ref, bh_ref,       # [384, 2*AP] bf16, [1, 2*AP] f32
                       act_ref,              # [TB, AP] f32  (action, lane-dense)
                       lp_ref):              # [TB, AP] f32  (log_prob, lane-dense)
    # read the scalar sample once, up front
    eps = noise_ref[0]

    # linear1 + relu : bf16 x bf16 -> f32 accumulate (native MXU mode)
    x = s_ref[...].astype(jnp.bfloat16)
    h1 = jnp.dot(x, w1_ref[...], preferred_element_type=jnp.float32) + b1_ref[...]
    h1 = jnp.maximum(h1, 0.0)

    # linear2 + relu
    h2 = jnp.dot(h1.astype(jnp.bfloat16), w2_ref[...],
                 preferred_element_type=jnp.float32) + b2_ref[...]
    h2 = jnp.maximum(h2, 0.0)

    # fused heads: one matmul produces [mean (lanes 0..AP) | log_std (AP..2AP)]
    heads = jnp.dot(h2.astype(jnp.bfloat16), wh_ref[...],
                    preferred_element_type=jnp.float32) + bh_ref[...]
    ap = heads.shape[-1] // 2                       # 128-lane aligned half
    mean = heads[:, :ap]
    log_std = jnp.clip(heads[:, ap:], LOG_STD_MIN, LOG_STD_MAX)
    std = jnp.exp(log_std)

    # reparameterized sample with a single scalar eps (matches torch
    # Normal(0,1).sample() with default shape)
    z = mean + std * eps
    action = jnp.tanh(z)

    # Normal(mean, std).log_prob(z) == -eps^2/2 - log_std - log(sqrt(2*pi))
    # (exact identity since z - mean == std * eps), then the tanh correction.
    log_prob = ((-0.5 * eps * eps) - log_std - _LOG_SQRT_2PI
                - jnp.log(1.0 - action * action + EPSILON))

    # two lane-dense (multiple-of-128 wide) stores, no concat / masked stores
    act_ref[...] = action
    lp_ref[...] = log_prob


def policy_network_sac_forward(state, packed, noise_scalar, *, block_b=512):
    """state: [B, num_inputs] f32; packed: dict from pack_params();
    noise_scalar: scalar f32 (the single N(0,1) sample).
    Returns (action [B, A], log_prob [B, A])."""
    B, NI = state.shape
    A = packed["num_actions"]
    AP = packed["wh"].shape[1] // 2          # lane-aligned half width
    H1P = packed["w1"].shape[1]
    H2P = packed["w2"].shape[1]

    # pad batch to a sublane multiple, pick batch tile
    b_pad = ((B + 7) // 8) * 8
    tb = min(block_b, b_pad)
    # for large batches make sure the grid has >= 2 steps (v7x megacore)
    if b_pad // tb < 2 and b_pad >= 256:
        tb = ((b_pad // 2 + 7) // 8) * 8
    b_pad = ((b_pad + tb - 1) // tb) * tb
    if b_pad != B:
        state = jnp.pad(state, ((0, b_pad - B), (0, 0)))

    noise = jnp.asarray(noise_scalar, jnp.float32).reshape(1)

    # advisory cost hint for XLA scheduling around the custom call
    flops = 2 * b_pad * (NI * H1P + H1P * H2P + H2P * 2 * AP)
    transcendentals = 3 * b_pad * 2 * AP                       # exp, tanh, log
    bytes_accessed = (
        b_pad * NI * 4                                         # state
        + 2 * (NI * H1P + H1P * H2P + H2P * 2 * AP)            # bf16 weights
        + 4 * (H1P + H2P + 2 * AP)                             # f32 biases
        + 2 * b_pad * AP * 4                                   # outputs
    )
    cost = pl.CostEstimate(flops=flops, transcendentals=transcendentals,
                           bytes_accessed=bytes_accessed)

    out_act, out_lp = pl.pallas_call(
        _policy_sac_kernel,
        out_shape=(jax.ShapeDtypeStruct((b_pad, AP), jnp.float32),
                   jax.ShapeDtypeStruct((b_pad, AP), jnp.float32)),
        grid_spec=pltpu.PrefetchScalarGridSpec(
            num_scalar_prefetch=1,                              # noise -> SMEM
            grid=(b_pad // tb,),
            in_specs=[
                pl.BlockSpec((tb, NI), lambda i, n: (i, 0)),    # state tile
                pl.BlockSpec((NI, H1P), lambda i, n: (0, 0)),   # w1 (resident)
                pl.BlockSpec((1, H1P), lambda i, n: (0, 0)),    # b1
                pl.BlockSpec((H1P, H2P), lambda i, n: (0, 0)),  # w2 (resident)
                pl.BlockSpec((1, H2P), lambda i, n: (0, 0)),    # b2
                pl.BlockSpec((H2P, 2 * AP), lambda i, n: (0, 0)),  # fused head W
                pl.BlockSpec((1, 2 * AP), lambda i, n: (0, 0)),    # fused head b
            ],
            out_specs=[
                pl.BlockSpec((tb, AP), lambda i, n: (i, 0)),    # action
                pl.BlockSpec((tb, AP), lambda i, n: (i, 0)),    # log_prob
            ],
        ),
        compiler_params=pltpu.CompilerParams(
            dimension_semantics=("parallel",),                  # batch -> megacore
        ),
        cost_estimate=cost,
    )(noise, state,
      packed["w1"], packed["b1"],
      packed["w2"], packed["b2"],
      packed["wh"], packed["bh"])

    return out_act[:B, :A], out_lp[:B, :A]


def init_params(key, num_inputs, num_actions):
    """Deterministic init mirroring nn.Linear's U(-1/sqrt(fan_in), 1/sqrt(fan_in)).
    Weights are stored as [in, out] (transposed vs. PyTorch's [out, in]), f32."""
    def linear(k, fan_in, fan_out):
        kw, kb = jax.random.split(k)
        bound = 1.0 / jnp.sqrt(jnp.float32(fan_in))
        w = jax.random.uniform(kw, (fan_in, fan_out), jnp.float32, -bound, bound)
        b = jax.random.uniform(kb, (1, fan_out), jnp.float32, -bound, bound)
        return w, b

    k1, k2, k3, k4 = jax.random.split(key, 4)
    w1, b1 = linear(k1, num_inputs, NN_LAYER_1)
    w2, b2 = linear(k2, NN_LAYER_1, NN_LAYER_2)
    wm, bm = linear(k3, NN_LAYER_2, num_actions)
    wl, bl = linear(k4, NN_LAYER_2, num_actions)
    return {"w1": w1, "b1": b1, "w2": w2, "b2": b2,
            "wm": wm, "bm": bm, "wl": wl, "bl": bl}


def _pad2d(x, rows, cols):
    return jnp.pad(x, ((0, rows - x.shape[0]), (0, cols - x.shape[1])))


def pack_params(raw):
    """Zero-pad hidden dims to (512, 384), fuse the two heads into one
    [H2_PAD, 2*AP] weight with each head half aligned to a 128-lane boundary,
    and cast weights to bf16 (biases stay f32)."""
    ni = raw["w1"].shape[0]
    A = raw["wm"].shape[1]
    AP = ((A + 127) // 128) * 128

    w1 = _pad2d(raw["w1"], ni, H1_PAD).astype(jnp.bfloat16)
    b1 = _pad2d(raw["b1"], 1, H1_PAD)
    w2 = _pad2d(raw["w2"], H1_PAD, H2_PAD).astype(jnp.bfloat16)
    b2 = _pad2d(raw["b2"], 1, H2_PAD)

    wh = jnp.zeros((H2_PAD, 2 * AP), jnp.float32)
    wh = wh.at[:raw["wm"].shape[0], :A].set(raw["wm"])
    wh = wh.at[:raw["wl"].shape[0], AP:AP + A].set(raw["wl"])
    wh = wh.astype(jnp.bfloat16)
    bh = jnp.zeros((1, 2 * AP), jnp.float32)
    bh = bh.at[:, :A].set(raw["bm"])
    bh = bh.at[:, AP:AP + A].set(raw["bl"])

    return {"w1": w1, "b1": b1, "w2": w2, "b2": b2, "wh": wh, "bh": bh,
            "num_actions": A}


def reference_forward(state, packed, noise_scalar):
    """Pure-JAX reference matching the PyTorch forward semantics, evaluated on
    the same bf16-stored, zero-padded, lane-aligned fused-head weights with the
    same bf16-operand / f32-accumulate dots the kernel uses, and with the
    *unsimplified* log-prob formula — validates both the kernel and the
    algebraic simplification."""
    def bdot(x, w):
        return jnp.dot(x.astype(jnp.bfloat16), w, preferred_element_type=jnp.float32)

    A = packed["num_actions"]
    AP = packed["wh"].shape[1] // 2
    h1 = jnp.maximum(bdot(state, packed["w1"]) + packed["b1"], 0.0)
    h2 = jnp.maximum(bdot(h1, packed["w2"]) + packed["b2"], 0.0)
    heads = bdot(h2, packed["wh"]) + packed["bh"]
    mean = heads[:, :A]
    log_std = jnp.clip(heads[:, AP:AP + A], LOG_STD_MIN, LOG_STD_MAX)
    std = jnp.exp(log_std)
    z = mean + std * noise_scalar
    action = jnp.tanh(z)
    log_prob = (-((z - mean) ** 2) / (2.0 * std * std) - log_std
                - jnp.log(jnp.sqrt(2.0 * jnp.pi))
                - jnp.log(1.0 - action * action + EPSILON))
    return action, log_prob


if __name__ == "__main__":
    num_inputs = 8
    num_actions = 4
    batch = 8

    key = jax.random.PRNGKey(0)
    k_params, k_state, k_noise = jax.random.split(key, 3)

    raw_params = init_params(k_params, num_inputs, num_actions)
    packed_params = pack_params(raw_params)

    state = jax.random.normal(k_state, (batch, num_inputs), jnp.float32)
    # single scalar, like torch.distributions.Normal(0,1).sample()
    # TODO(synk): PyTorch draws one scalar eps shared across the whole batch;
    # per-element noise would need a (B, A) noise input instead.
    noise = jax.random.normal(k_noise, (), jnp.float32)

    action, log_prob = policy_network_sac_forward(state, packed_params, noise)
    action = jax.block_until_ready(action)
    log_prob = jax.block_until_ready(log_prob)

    ref_action, ref_log_prob = reference_forward(state, packed_params, noise)
    assert action.shape == (batch, num_actions)
    assert log_prob.shape == (batch, num_actions)
    assert jnp.allclose(action, ref_action, atol=1e-4, rtol=1e-4), "action mismatch"
    assert jnp.allclose(log_prob, ref_log_prob, atol=1e-3, rtol=1e-3), "log_prob mismatch"

    print("KERNEL_OK")
</pallas_src>

<mosaic_0001>
module attributes {stable_mosaic.version = 11 : i64} {
  func.func @_policy_sac_kernel(%arg0: i32, %arg1: memref<1xf32, #tpu.memory_space<smem>>, %arg2: memref<8x8xf32, #tpu.memory_space<vmem>>, %arg3: memref<8x512xbf16, #tpu.memory_space<vmem>>, %arg4: memref<1x512xf32, #tpu.memory_space<vmem>>, %arg5: memref<512x384xbf16, #tpu.memory_space<vmem>>, %arg6: memref<1x384xf32, #tpu.memory_space<vmem>>, %arg7: memref<384x256xbf16, #tpu.memory_space<vmem>>, %arg8: memref<1x256xf32, #tpu.memory_space<vmem>>, %arg9: memref<8x128xf32, #tpu.memory_space<vmem>>, %arg10: memref<8x128xf32, #tpu.memory_space<vmem>>) attributes {dimension_semantics = [#tpu.dimension_semantics<parallel>], iteration_bounds = array<i64: 1>, scalar_prefetch = 1 : i64, scratch_operands = 0 : i64, tpu.core_type = #tpu.core_type<tc>, window_params = [{transform_indices = @transform_0, window_bounds = array<i64: 8, 8>}, {pipeline_mode = #tpu.pipeline_mode<synchronous>, transform_indices = @transform_1, window_bounds = array<i64: 8, 512>}, {pipeline_mode = #tpu.pipeline_mode<synchronous>, transform_indices = @transform_2, window_bounds = array<i64: 1, 512>}, {pipeline_mode = #tpu.pipeline_mode<synchronous>, transform_indices = @transform_3, window_bounds = array<i64: 512, 384>}, {pipeline_mode = #tpu.pipeline_mode<synchronous>, transform_indices = @transform_4, window_bounds = array<i64: 1, 384>}, {pipeline_mode = #tpu.pipeline_mode<synchronous>, transform_indices = @transform_5, window_bounds = array<i64: 384, 256>}, {pipeline_mode = #tpu.pipeline_mode<synchronous>, transform_indices = @transform_6, window_bounds = array<i64: 1, 256>}, {transform_indices = @transform_7, window_bounds = array<i64: 8, 128>}, {transform_indices = @transform_8, window_bounds = array<i64: 8, 128>}]} {
    %c0 = arith.constant 0 : index
    %0 = memref.load %arg1[%c0] : memref<1xf32, #tpu.memory_space<smem>>
    %c0_0 = arith.constant 0 : index
    %c0_1 = arith.constant 0 : index
    %1 = vector.load %arg2[%c0_0, %c0_1] : memref<8x8xf32, #tpu.memory_space<vmem>>, vector<8x8xf32>
    %2 = arith.truncf %1 : vector<8x8xf32> to vector<8x8xbf16>
    %c0_2 = arith.constant 0 : index
    %c0_3 = arith.constant 0 : index
    %3 = vector.load %arg3[%c0_2, %c0_3] : memref<8x512xbf16, #tpu.memory_space<vmem>>, vector<8x512xbf16>
    %cst = arith.constant dense<0.000000e+00> : vector<8x512xf32>
    %4 = tpu.matmul %2, %3, %cst {dimension_numbers = #tpu.dot_dimension_numbers<[1], [0], [0], [1], [0, 0, 1, 1], [], []>} : vector<8x8xbf16>, vector<8x512xbf16>, vector<8x512xf32> -> vector<8x512xf32>
    %c0_4 = arith.constant 0 : index
    %c0_5 = arith.constant 0 : index
    %5 = vector.load %arg4[%c0_4, %c0_5] : memref<1x512xf32, #tpu.memory_space<vmem>>, vector<1x512xf32>
    %6 = vector.broadcast %5 : vector<1x512xf32> to vector<8x512xf32>
    %7 = arith.addf %4, %6 : vector<8x512xf32>
    %cst_6 = arith.constant 0.000000e+00 : f32
    %8 = vector.broadcast %cst_6 : f32 to vector<8x512xf32>
    %9 = arith.maximumf %7, %8 : vector<8x512xf32>
    %10 = arith.truncf %9 : vector<8x512xf32> to vector<8x512xbf16>
    %c0_7 = arith.constant 0 : index
    %c0_8 = arith.constant 0 : index
    %11 = vector.load %arg5[%c0_7, %c0_8] : memref<512x384xbf16, #tpu.memory_space<vmem>>, vector<512x384xbf16>
    %cst_9 = arith.constant dense<0.000000e+00> : vector<8x384xf32>
    %12 = tpu.matmul %10, %11, %cst_9 {dimension_numbers = #tpu.dot_dimension_numbers<[1], [0], [0], [1], [0, 0, 1, 1], [], []>} : vector<8x512xbf16>, vector<512x384xbf16>, vector<8x384xf32> -> vector<8x384xf32>
    %c0_10 = arith.constant 0 : index
    %c0_11 = arith.constant 0 : index
    %13 = vector.load %arg6[%c0_10, %c0_11] : memref<1x384xf32, #tpu.memory_space<vmem>>, vector<1x384xf32>
    %14 = vector.broadcast %13 : vector<1x384xf32> to vector<8x384xf32>
    %15 = arith.addf %12, %14 : vector<8x384xf32>
    %cst_12 = arith.constant 0.000000e+00 : f32
    %16 = vector.broadcast %cst_12 : f32 to vector<8x384xf32>
    %17 = arith.maximumf %15, %16 : vector<8x384xf32>
    %18 = arith.truncf %17 : vector<8x384xf32> to vector<8x384xbf16>
    %c0_13 = arith.constant 0 : index
    %c0_14 = arith.constant 0 : index
    %19 = vector.load %arg7[%c0_13, %c0_14] : memref<384x256xbf16, #tpu.memory_space<vmem>>, vector<384x256xbf16>
    %cst_15 = arith.constant dense<0.000000e+00> : vector<8x256xf32>
    %20 = tpu.matmul %18, %19, %cst_15 {dimension_numbers = #tpu.dot_dimension_numbers<[1], [0], [0], [1], [0, 0, 1, 1], [], []>} : vector<8x384xbf16>, vector<384x256xbf16>, vector<8x256xf32> -> vector<8x256xf32>
    %c0_16 = arith.constant 0 : index
    %c0_17 = arith.constant 0 : index
    %21 = vector.load %arg8[%c0_16, %c0_17] : memref<1x256xf32, #tpu.memory_space<vmem>>, vector<1x256xf32>
    %22 = vector.broadcast %21 : vector<1x256xf32> to vector<8x256xf32>
    %23 = arith.addf %20, %22 : vector<8x256xf32>
    %24 = vector.extract_strided_slice %23 {offsets = [0, 0], sizes = [8, 128], strides = [1, 1]} : vector<8x256xf32> to vector<8x128xf32>
    %25 = vector.extract_strided_slice %23 {offsets = [0, 128], sizes = [8, 128], strides = [1, 1]} : vector<8x256xf32> to vector<8x128xf32>
    %cst_18 = arith.constant -2.000000e+01 : f32
    %cst_19 = arith.constant 2.000000e+00 : f32
    %26 = vector.broadcast %cst_18 : f32 to vector<8x128xf32>
    %27 = arith.maximumf %26, %25 : vector<8x128xf32>
    %28 = vector.broadcast %cst_19 : f32 to vector<8x128xf32>
    %29 = arith.minimumf %28, %27 : vector<8x128xf32>
    %30 = math.exp %29 : vector<8x128xf32>
    %31 = vector.broadcast %0 : f32 to vector<8x128xf32>
    %32 = arith.mulf %30, %31 : vector<8x128xf32>
    %33 = arith.addf %24, %32 : vector<8x128xf32>
    %34 = math.tanh %33 : vector<8x128xf32>
    %cst_20 = arith.constant -5.000000e-01 : f32
    %35 = arith.mulf %cst_20, %0 : f32
    %36 = arith.mulf %35, %0 : f32
    %37 = vector.broadcast %36 : f32 to vector<8x128xf32>
    %38 = arith.subf %37, %29 : vector<8x128xf32>
    %cst_21 = arith.constant 0.918938517 : f32
    %39 = vector.broadcast %cst_21 : f32 to vector<8x128xf32>
    %40 = arith.subf %38, %39 : vector<8x128xf32>
    %41 = arith.mulf %34, %34 : vector<8x128xf32>
    %cst_22 = arith.constant 1.000000e+00 : f32
    %42 = vector.broadcast %cst_22 : f32 to vector<8x128xf32>
    %43 = arith.subf %42, %41 : vector<8x128xf32>
    %cst_23 = arith.constant 9.99999997E-7 : f32
    %44 = vector.broadcast %cst_23 : f32 to vector<8x128xf32>
    %45 = arith.addf %43, %44 : vector<8x128xf32>
    %46 = math.log %45 : vector<8x128xf32>
    %47 = arith.subf %40, %46 : vector<8x128xf32>
    %c0_24 = arith.constant 0 : index
    %c0_25 = arith.constant 0 : index
    %48 = vector.load %arg9[%c0_24, %c0_25] : memref<8x128xf32, #tpu.memory_space<vmem>>, vector<8x128xf32>
    tpu.vector_store %arg9[%c0_24, %c0_25], %34 {strides = array<i32>} : memref<8x128xf32, #tpu.memory_space<vmem>>, vector<8x128xf32>,
    %c0_26 = arith.constant 0 : index
    %c0_27 = arith.constant 0 : index
    %49 = vector.load %arg10[%c0_26, %c0_27] : memref<8x128xf32, #tpu.memory_space<vmem>>, vector<8x128xf32>
    tpu.vector_store %arg10[%c0_26, %c0_27], %47 {strides = array<i32>} : memref<8x128xf32, #tpu.memory_space<vmem>>, vector<8x128xf32>,
    return
  }
  func.func @transform_0(%arg0: i32, %arg1: memref<1xf32, #tpu.memory_space<smem>>) -> (i32, i32) {
    %c0_i32 = arith.constant 0 : i32
    %c0_i32_0 = arith.constant 0 : i32
    return %arg0, %c0_i32 : i32, i32
  }
  func.func @transform_1(%arg0: i32, %arg1: memref<1xf32, #tpu.memory_space<smem>>) -> (i32, i32) {
    %c0_i32 = arith.constant 0 : i32
    %c0_i32_0 = arith.constant 0 : i32
    %c0_i32_1 = arith.constant 0 : i32
    return %c0_i32, %c0_i32_0 : i32, i32
  }
  func.func @transform_2(%arg0: i32, %arg1: memref<1xf32, #tpu.memory_space<smem>>) -> (i32, i32) {
    %c0_i32 = arith.constant 0 : i32
    %c0_i32_0 = arith.constant 0 : i32
    %c0_i32_1 = arith.constant 0 : i32
    return %c0_i32, %c0_i32_0 : i32, i32
  }
  func.func @transform_3(%arg0: i32, %arg1: memref<1xf32, #tpu.memory_space<smem>>) -> (i32, i32) {
    %c0_i32 = arith.constant 0 : i32
    %c0_i32_0 = arith.constant 0 : i32
    %c0_i32_1 = arith.constant 0 : i32
    return %c0_i32, %c0_i32_0 : i32, i32
  }
  func.func @transform_4(%arg0: i32, %arg1: memref<1xf32, #tpu.memory_space<smem>>) -> (i32, i32) {
    %c0_i32 = arith.constant 0 : i32
    %c0_i32_0 = arith.constant 0 : i32
    %c0_i32_1 = arith.constant 0 : i32
    return %c0_i32, %c0_i32_0 : i32, i32
  }
  func.func @transform_5(%arg0: i32, %arg1: memref<1xf32, #tpu.memory_space<smem>>) -> (i32, i32) {
    %c0_i32 = arith.constant 0 : i32
    %c0_i32_0 = arith.constant 0 : i32
    %c0_i32_1 = arith.constant 0 : i32
    return %c0_i32, %c0_i32_0 : i32, i32
  }
  func.func @transform_6(%arg0: i32, %arg1: memref<1xf32, #tpu.memory_space<smem>>) -> (i32, i32) {
    %c0_i32 = arith.constant 0 : i32
    %c0_i32_0 = arith.constant 0 : i32
    %c0_i32_1 = arith.constant 0 : i32
    return %c0_i32, %c0_i32_0 : i32, i32
  }
  func.func @transform_7(%arg0: i32, %arg1: memref<1xf32, #tpu.memory_space<smem>>) -> (i32, i32) {
    %c0_i32 = arith.constant 0 : i32
    %c0_i32_0 = arith.constant 0 : i32
    return %arg0, %c0_i32 : i32, i32
  }
  func.func @transform_8(%arg0: i32, %arg1: memref<1xf32, #tpu.memory_space<smem>>) -> (i32, i32) {
    %c0_i32 = arith.constant 0 : i32
    %c0_i32_0 = arith.constant 0 : i32
    return %arg0, %c0_i32 : i32, i32
  }
}

</mosaic_0001>

<llo_original>
// kernel: tpu_custom_call.1
$region0: #{tpu_custom_call.1}
  #allocation0 [shape = 'u32[]', space=smem, size = 0x4, offset = 0x4, fixed_abs, tag = 'smem constant byte address 0x4 - core index']
  #allocation1 [shape = 'u32[144,128]{1,0:T(1,128)}', space=vmem, size = 0x12000, scoped, tag = 'internal scratch']
  #allocation2 [shape = 's32[1]{0}', space=sflag, size = 0x4, scoped, tag = 'scoped memory for tpu_custom_call.1']
  #allocation3 [shape = 'f32[1]{0:T(128)S(6)}', space=smem, size = 0x200, scoped, tag = 'prefetched SMEM operand 0']
  %s0 = inlined_call_operand.<no memory space> [shape: f32[1], index: 0, kind: input, shape index: {}]
  %s1 = inlined_call_operand.hbm [shape: f32[8,8], index: 1, kind: input, shape index: {}]
  %s2 = inlined_call_operand.hbm [shape: bf16[8,512], index: 2, kind: input, shape index: {}]
  %s3 = inlined_call_operand.vmem [shape: f32[1,512], index: 3, kind: input, shape index: {}]
  %s4 = inlined_call_operand.hbm [shape: bf16[512,384], index: 4, kind: input, shape index: {}]
  %s5 = inlined_call_operand.vmem [shape: f32[1,384], index: 5, kind: input, shape index: {}]
  %s6 = inlined_call_operand.hbm [shape: bf16[384,256], index: 6, kind: input, shape index: {}]
  %s7 = inlined_call_operand.vmem [shape: f32[1,256], index: 7, kind: input, shape index: {}]
  %s8 = inlined_call_operand.hbm [shape: f32[8,128], index: 8, kind: output, shape index: {0}]
  %s9 = inlined_call_operand.hbm [shape: f32[8,128], index: 9, kind: output, shape index: {1}]
  %10 = xla_tuple %s8, %s9
  %s11 = sld [smem:[#allocation0]]
  $region62: #{tpu_custom_call.1} parent=0
    _
  %s13 = ssub.s32 1, %s11
  %s14 = scalar_select 0, %s13, %s11
  %15 = sst [smem:[#allocation3]] %s0
  $region1: #{tpu_custom_call.1} parent=0
    #allocation4 [shape = 'u8[4096]{0}', space=vmem, size = 0x1000, scoped, tag = 'input window, operand 1, single buffered']
    #allocation5 [shape = 's32[1]{0}', space=sflag, size = 0x4, scoped, tag = 'scoped memory for tpu_custom_call.1']
    #allocation6 [shape = 's32[1]{0}', space=sflag, size = 0x4, scoped, tag = 'scoped memory for tpu_custom_call.1']
    #allocation7 [shape = 'u8[8192]{0}', space=vmem, size = 0x2000, scoped, tag = 'input window, operand 2, single buffered']
    #allocation8 [shape = 's32[1]{0}', space=sflag, size = 0x4, scoped, tag = 'scoped memory for tpu_custom_call.1']
    #allocation9 [shape = 'u8[393216]{0}', space=vmem, size = 0x60000, scoped, tag = 'input window, operand 4, single buffered']
    #allocation10 [shape = 'u8[196608]{0}', space=vmem, size = 0x30000, scoped, tag = 'input window, operand 6, single buffered']
    #allocation11 [shape = 's32[1]{0}', space=sflag, size = 0x4, scoped, tag = 'scoped memory for tpu_custom_call.1']
    #allocation12 [shape = 'u8[4096]{0}', space=vmem, size = 0x1000, scoped, tag = 'output window, operand 0, single buffered']
    #allocation13 [shape = 'u8[4096]{0}', space=vmem, size = 0x1000, scoped, tag = 'output window, operand 1, single buffered']
    #allocation14 [shape = 's32[1]{0}', space=sflag, size = 0x4, scoped, tag = 'scoped memory for tpu_custom_call.1']
    %16 = vsyncpa [#allocation5], 0
    %17 = vsyncpa [#allocation8], 0
    %18 = vsyncpa [#allocation11], 0
    %19 = vsyncpa [#allocation6], 0
    %20 = vsyncpa [#allocation14], 0
    // Predicated region
    $region2: #{tpu_custom_call.1} parent=1 // pred_check
      _
    $region3: #{tpu_custom_call.1} parent=1 // pred_check_branch
      %22 = sbr.rel (0) target = $region5
    $region4: #{tpu_custom_call.1} parent=1 // pred_region
      %s24 = ssub.s32 128, 128
      %25 = vsyncadd [#allocation5], %s24
      %s27 = sshll.u32 [#allocation4], 4
      %s28 = int_to_ptr.vmem [resolvable:$true] %s27
      %30 = dma.hbm_to_vmem [thread:$0]  %s1, 128, %s28, [#allocation5]
    $region5: #{tpu_custom_call.1} parent=1 // pred_fallthru
      _
    // Predicated region
    $region6: #{tpu_custom_call.1} parent=1 // pred_check
      _
    $region7: #{tpu_custom_call.1} parent=1 // pred_check_branch
      %32 = sbr.rel (0) target = $region9
    $region8: #{tpu_custom_call.1} parent=1 // pred_region
      %s34 = ssub.s32 256, 256
      %35 = vsyncadd [#allocation8], %s34
      %s37 = sshll.u32 [#allocation7], 4
      %s38 = int_to_ptr.vmem [resolvable:$true] %s37
      %40 = dma.hbm_to_vmem [thread:$0]  %s2, 256, %s38, [#allocation8]
    $region9: #{tpu_custom_call.1} parent=1 // pred_fallthru
      _
    // Predicated region
    $region10: #{tpu_custom_call.1} parent=1 // pred_check
      _
    $region11: #{tpu_custom_call.1} parent=1 // pred_check_branch
      %42 = sbr.rel (0) target = $region13
    $region12: #{tpu_custom_call.1} parent=1 // pred_region
      _
    $region13: #{tpu_custom_call.1} parent=1 // pred_fallthru
      _
    // Predicated region
    $region14: #{tpu_custom_call.1} parent=1 // pred_check
      _
    $region15: #{tpu_custom_call.1} parent=1 // pred_check_branch
      %44 = sbr.rel (0) target = $region17
    $region16: #{tpu_custom_call.1} parent=1 // pred_region
      %s46 = ssub.s32 12288, 12288
      %47 = vsyncadd [#allocation8], %s46
      %s48 = sshll.u32 [#allocation9], 4
      %s49 = int_to_ptr.vmem [resolvable:$true] %s48
      %54 = dma.hbm_to_vmem [thread:$0]  %s4, 12288, %s49, [#allocation8], 192, 192, 12
    $region17: #{tpu_custom_call.1} parent=1 // pred_fallthru
      _
    // Predicated region
    $region18: #{tpu_custom_call.1} parent=1 // pred_check
      _
    $region19: #{tpu_custom_call.1} parent=1 // pred_check_branch
      %56 = sbr.rel (0) target = $region21
    $region20: #{tpu_custom_call.1} parent=1 // pred_region
      _
    $region21: #{tpu_custom_call.1} parent=1 // pred_fallthru
      _
    // Predicated region
    $region22: #{tpu_custom_call.1} parent=1 // pred_check
      _
    $region23: #{tpu_custom_call.1} parent=1 // pred_check_branch
      %58 = sbr.rel (0) target = $region25
    $region24: #{tpu_custom_call.1} parent=1 // pred_region
      %s60 = ssub.s32 6144, 6144
      %61 = vsyncadd [#allocation11], %s60
      %s62 = sshll.u32 [#allocation10], 4
      %s63 = int_to_ptr.vmem [resolvable:$true] %s62
      %68 = dma.hbm_to_vmem [thread:$0]  %s6, 6144, %s63, [#allocation11], 128, 128, 8
    $region25: #{tpu_custom_call.1} parent=1 // pred_fallthru
      _
    // Predicated region
    $region26: #{tpu_custom_call.1} parent=1 // pred_check
      _
    $region27: #{tpu_custom_call.1} parent=1 // pred_check_branch
      %70 = sbr.rel (0) target = $region29
    $region28: #{tpu_custom_call.1} parent=1 // pred_region
      _
    $region29: #{tpu_custom_call.1} parent=1 // pred_fallthru
      _
    // Predicated region
    $region30: #{tpu_custom_call.1} parent=1 // pred_check
      _
    $region31: #{tpu_custom_call.1} parent=1 // pred_check_branch
      %72 = sbr.rel (0) target = $region33
    $region32: #{tpu_custom_call.1} parent=1 // pred_region
      %73 = dma.done [#allocation5], 128
    $region33: #{tpu_custom_call.1} parent=1 // pred_fallthru
      _
    // Predicated region
    $region34: #{tpu_custom_call.1} parent=1 // pred_check
      _
    $region35: #{tpu_custom_call.1} parent=1 // pred_check_branch
      %75 = sbr.rel (0) target = $region37
    $region36: #{tpu_custom_call.1} parent=1 // pred_region
      %76 = dma.done [#allocation8], 256
    $region37: #{tpu_custom_call.1} parent=1 // pred_fallthru
      _
    // Predicated region
    $region38: #{tpu_custom_call.1} parent=1 // pred_check
      _
    $region39: #{tpu_custom_call.1} parent=1 // pred_check_branch
      %78 = sbr.rel (0) target = $region41
    $region40: #{tpu_custom_call.1} parent=1 // pred_region
      %79 = dma.done [#allocation8], 12288
    $region41: #{tpu_custom_call.1} parent=1 // pred_fallthru
      _
    // Predicated region
    $region42: #{tpu_custom_call.1} parent=1 // pred_check
      _
    $region43: #{tpu_custom_call.1} parent=1 // pred_check_branch
      %81 = sbr.rel (0) target = $region45
    $region44: #{tpu_custom_call.1} parent=1 // pred_region
      %82 = dma.done [#allocation11], 6144
    $region45: #{tpu_custom_call.1} parent=1 // pred_fallthru
      _
    %s84 = sld [smem:[#allocation3]]
    %v85 = vld [vmem:[#allocation4] sm:$0xff]
    %v86 = vpack.c.bf16 %v85, %v85
    %v87 = vld [vmem:[#allocation7] sm:$0xff]
    %v88 = vld [vmem:[#allocation7 + $0x8] sm:$0xff]
    %v89 = vld [vmem:[%s3] sm:$0xf]
    %v91 = vlaneseq
    %v92 = vshrl.u32 %v91, 7
    %v93 = vsub.s32 0, %v92
    %v94 = vrot.slane %v89, %v93
    %v95 = vlaneseq
    %v96 = vshrl.u32 %v95, 7
    %v97 = vsub.s32 1, %v96
    %v98 = vrot.slane %v89, %v97
    %v99 = vlaneseq
    %v100 = vshrl.u32 %v99, 7
    %v101 = vsub.s32 2, %v100
    %v102 = vrot.slane %v89, %v101
    %v103 = vlaneseq
    %v104 = vshrl.u32 %v103, 7
    %v105 = vsub.s32 3, %v104
    %v106 = vrot.slane %v89, %v105
    %v113 = vunpack.c.l.b16 %v87
    %v114 = vunpack.c.h.b16 %v87
    %v115 = vunpack.c.l.b16 %v88
    %v116 = vunpack.c.h.b16 %v88
    %v117 = vpack.c.b16 %v113, %v113
    %v118 = vpack.c.b16 %v114, %v114
    %v119 = vpack.c.b16 %v115, %v115
    %v120 = vpack.c.b16 %v116, %v116
    %vm121 = vcmask 64512
    %v123 = vsel %vm121, %v86, 0
    %vm125 = vcmask 1043456
    %v127 = vsel %vm125, %v117, 0
    %v130 = vsel %vm125, %v118, 0
    %v133 = vsel %vm125, %v119, 0
    %v136 = vsel %vm125, %v120, 0
    %138 = vmatprep.subr.bf16.mxu0 %v130
    %139 = vmatpush1.bf16.msra.mxu0 %v127
    %140 = vmatprep.subr.bf16.mxu0 0
    %141 = vmatpush1.bf16.msra.mxu0 0
    %142 = vmatprep.subr.bf16.mxu0 0
    %143 = vmatpush1.bf16.msra.mxu0 0
    %144 = vmatprep.subr.bf16.mxu0 0
    %145 = vmatpush1.bf16.msra.mxu0 0
    %146 = vmatprep.subr.bf16.mxu0 0
    %147 = vmatpush1.bf16.msra.mxu0 0
    %148 = vmatprep.subr.bf16.mxu0 0
    %149 = vmatpush1.bf16.msra.mxu0 0
    %150 = vmatprep.subr.bf16.mxu0 0
    %151 = vmatpush1.bf16.msra.mxu0 0
    %152 = vmatprep.subr.bf16.mxu0 0
    %153 = vmatpush1.bf16.msra.mxu0 0
    %154 = vmatprep.subr.bf16.mxu0 0
    %155 = vmatpush1.bf16.msra.mxu0 0
    %156 = vmatprep.subr.bf16.mxu0 0
    %157 = vmatpush1.bf16.msra.mxu0 0
    %158 = vmatprep.subr.bf16.mxu0 0
    %159 = vmatpush1.bf16.msra.mxu0 0
    %160 = vmatprep.subr.bf16.mxu0 0
    %161 = vmatpush1.bf16.msra.mxu0 0
    %162 = vmatprep.subr.bf16.mxu0 0
    %163 = vmatpush1.bf16.msra.mxu0 0
    %164 = vmatprep.subr.bf16.mxu0 0
    %165 = vmatpush1.bf16.msra.mxu0 0
    %166 = vmatprep.subr.bf16.mxu0 0
    %167 = vmatpush1.bf16.msra.mxu0 0
    %168 = vmatprep.subr.bf16.mxu0 0
    %169 = vmatpush1.bf16.msra.mxu0 0
    %170 = vmatprep.mubr.bf16.mxu0 0
    %171 = vmatmul.mubr.bf16.gmra.mrb[0].mxu0 %v123
    %v172 = vpop.f32.mrb[0].mxu0
    %v173 = vadd.f32 %v94, %v172
    %v174 = vpop.f32.mrb[0].mxu0
    %v175 = vadd.f32 %v98, %v174
    %v176 = vpop.f32.mrb[0].mxu0
    %v177 = vpop.f32.mrb[0].mxu0
    %178 = vdwg.mxu0
    %179 = vmatprep.subr.bf16.mxu0 %v136
    %180 = vmatpush1.bf16.msra.mxu0 %v133
    %181 = vmatprep.subr.bf16.mxu0 0
    %182 = vmatpush1.bf16.msra.mxu0 0
    %183 = vmatprep.subr.bf16.mxu0 0
    %184 = vmatpush1.bf16.msra.mxu0 0
    %185 = vmatprep.subr.bf16.mxu0 0
    %186 = vmatpush1.bf16.msra.mxu0 0
    %187 = vmatprep.subr.bf16.mxu0 0
    %188 = vmatpush1.bf16.msra.mxu0 0
    %189 = vmatprep.subr.bf16.mxu0 0
    %190 = vmatpush1.bf16.msra.mxu0 0
    %191 = vmatprep.subr.bf16.mxu0 0
    %192 = vmatpush1.bf16.msra.mxu0 0
    %193 = vmatprep.subr.bf16.mxu0 0
    %194 = vmatpush1.bf16.msra.mxu0 0
    %195 = vmatprep.subr.bf16.mxu0 0
    %196 = vmatpush1.bf16.msra.mxu0 0
    %197 = vmatprep.subr.bf16.mxu0 0
    %198 = vmatpush1.bf16.msra.mxu0 0
    %199 = vmatprep.subr.bf16.mxu0 0
    %200 = vmatpush1.bf16.msra.mxu0 0
    %201 = vmatprep.subr.bf16.mxu0 0
    %202 = vmatpush1.bf16.msra.mxu0 0
    %203 = vmatprep.subr.bf16.mxu0 0
    %204 = vmatpush1.bf16.msra.mxu0 0
    %205 = vmatprep.subr.bf16.mxu0 0
    %206 = vmatpush1.bf16.msra.mxu0 0
    %207 = vmatprep.subr.bf16.mxu0 0
    %208 = vmatpush1.bf16.msra.mxu0 0
    %209 = vmatprep.subr.bf16.mxu0 0
    %210 = vmatpush1.bf16.msra.mxu0 0
    %211 = vmatprep.mubr.bf16.mxu0 0
    %212 = vmatmul.mubr.bf16.gmra.mrb[0].mxu0 %v123
    %v213 = vpop.f32.mrb[0].mxu0
    %v214 = vadd.f32 %v102, %v213
    %v215 = vpop.f32.mrb[0].mxu0
    %v216 = vadd.f32 %v106, %v215
    %v217 = vpop.f32.mrb[0].mxu0
    %v218 = vpop.f32.mrb[0].mxu0
    %219 = vdwg.mxu0
    %v220 = vmax.f32 %v173, 0.0
    %v221 = vmax.f32 %v175, 0.0
    %v222 = vmax.f32 %v214, 0.0
    %v223 = vmax.f32 %v216, 0.0
    %v224 = vpack.c.bf16 %v220, %v220
    %v225 = vpack.c.bf16 %v221, %v221
    %v226 = vpack.c.bf16 %v222, %v222
    %v227 = vpack.c.bf16 %v223, %v223
    %v228 = vld [vmem:[#allocation9] sm:$0xff]
    %v229 = vld [vmem:[#allocation9 + $0x8] sm:$0xf]
    %v230 = vld [vmem:[#allocation9 + $0xc] sm:$0xff]
    %v231 = vld [vmem:[#allocation9 + $0x14] sm:$0xf]
    %v232 = vld [vmem:[#allocation9 + $0x18] sm:$0xff]
    %v233 = vld [vmem:[#allocation9 + $0x20] sm:$0xf]
    %v234 = vld [vmem:[#allocation9 + $0x24] sm:$0xff]
    %v235 = vld [vmem:[#allocation9 + $0x2c] sm:$0xf]
    %v236 = vld [vmem:[#allocation9 + $0x30] sm:$0xff]
    %v237 = vld [vmem:[#allocation9 + $0x38] sm:$0xf]
    %v238 = vld [vmem:[#allocation9 + $0x3c] sm:$0xff]
    %v239 = vld [vmem:[#allocation9 + $0x44] sm:$0xf]
    %v240 = vld [vmem:[#allocation9 + $0x48] sm:$0xff]
    %v241 = vld [vmem:[#allocation9 + $0x50] sm:$0xf]
    %v242 = vld [vmem:[#allocation9 + $0x54] sm:$0xff]
    %v243 = vld [vmem:[#allocation9 + $0x5c] sm:$0xf]
    %v244 = vld [vmem:[#allocation9 + $0x60] sm:$0xff]
    %v245 = vld [vmem:[#allocation9 + $0x68] sm:$0xf]
    %v246 = vld [vmem:[#allocation9 + $0x6c] sm:$0xff]
    %v247 = vld [vmem:[#allocation9 + $0x74] sm:$0xf]
    %v248 = vld [vmem:[#allocation9 + $0x78] sm:$0xff]
    %v249 = vld [vmem:[#allocation9 + $0x80] sm:$0xf]
    %v250 = vld [vmem:[#allocation9 + $0x84] sm:$0xff]
    %v251 = vld [vmem:[#allocation9 + $0x8c] sm:$0xf]
    %v252 = vld [vmem:[#allocation9 + $0x90] sm:$0xff]
    %v253 = vld [vmem:[#allocation9 + $0x98] sm:$0xf]
    %v254 = vld [vmem:[#allocation9 + $0x9c] sm:$0xff]
    %v255 = vld [vmem:[#allocation9 + $0xa4] sm:$0xf]
    %v256 = vld [vmem:[#allocation9 + $0xa8] sm:$0xff]
    %v257 = vld [vmem:[#allocation9 + $0xb0] sm:$0xf]
    %v258 = vld [vmem:[#allocation9 + $0xb4] sm:$0xff]
    %v259 = vld [vmem:[#allocation9 + $0xbc] sm:$0xf]
    %v260 = vld [vmem:[#allocation9 + $0xc0] sm:$0xff]
    %v261 = vld [vmem:[#allocation9 + $0xc8] sm:$0xf]
    %v262 = vld [vmem:[#allocation9 + $0xcc] sm:$0xff]
    %v263 = vld [vmem:[#allocation9 + $0xd4] sm:$0xf]
    %v264 = vld [vmem:[#allocation9 + $0xd8] sm:$0xff]
    %v265 = vld [vmem:[#allocation9 + $0xe0] sm:$0xf]
    %v266 = vld [vmem:[#allocation9 + $0xe4] sm:$0xff]
    %v267 = vld [vmem:[#allocation9 + $0xec] sm:$0xf]
    %v268 = vld [vmem:[#allocation9 + $0xf0] sm:$0xff]
    %v269 = vld [vmem:[#allocation9 + $0xf8] sm:$0xf]
    %v270 = vld [vmem:[#allocation9 + $0xfc] sm:$0xff]
    %v271 = vld [vmem:[#allocation9 + $0x104] sm:$0xf]
    %v272 = vld [vmem:[#allocation9 + $0x108] sm:$0xff]
    %v273 = vld [vmem:[#allocation9 + $0x110] sm:$0xf]
    %v274 = vld [vmem:[#allocation9 + $0x114] sm:$0xff]
    %v275 = vld [vmem:[#allocation9 + $0x11c] sm:$0xf]
    %v276 = vld [vmem:[#allocation9 + $0x120] sm:$0xff]
    %v277 = vld [vmem:[#allocation9 + $0x128] sm:$0xf]
    %v278 = vld [vmem:[#allocation9 + $0x12c] sm:$0xff]
    %v279 = vld [vmem:[#allocation9 + $0x134] sm:$0xf]
    %v280 = vld [vmem:[#allocation9 + $0x138] sm:$0xff]
    %v281 = vld [vmem:[#allocation9 + $0x140] sm:$0xf]
    %v282 = vld [vmem:[#allocation9 + $0x144] sm:$0xff]
    %v283 = vld [vmem:[#allocation9 + $0x14c] sm:$0xf]
    %v284 = vld [vmem:[#allocation9 + $0x150] sm:$0xff]
    %v285 = vld [vmem:[#allocation9 + $0x158] sm:$0xf]
    %v286 = vld [vmem:[#allocation9 + $0x15c] sm:$0xff]
    %v287 = vld [vmem:[#allocation9 + $0x164] sm:$0xf]
    %v288 = vld [vmem:[#allocation9 + $0x168] sm:$0xff]
    %v289 = vld [vmem:[#allocation9 + $0x170] sm:$0xf]
    %v290 = vld [vmem:[#allocation9 + $0x174] sm:$0xff]
    %v291 = vld [vmem:[#allocation9 + $0x17c] sm:$0xf]
    %v292 = vld [vmem:[#allocation9 + $0x180] sm:$0xff]
    %v293 = vld [vmem:[#allocation9 + $0x188] sm:$0xf]
    %v294 = vld [vmem:[#allocation9 + $0x18c] sm:$0xff]
    %v295 = vld [vmem:[#allocation9 + $0x194] sm:$0xf]
    %v296 = vld [vmem:[#allocation9 + $0x198] sm:$0xff]
    %v297 = vld [vmem:[#allocation9 + $0x1a0] sm:$0xf]
    %v298 = vld [vmem:[#allocation9 + $0x1a4] sm:$0xff]
    %v299 = vld [vmem:[#allocation9 + $0x1ac] sm:$0xf]
    %v300 = vld [vmem:[#allocation9 + $0x1b0] sm:$0xff]
    %v301 = vld [vmem:[#allocation9 + $0x1b8] sm:$0xf]
    %v302 = vld [vmem:[#allocation9 + $0x1bc] sm:$0xff]
    %v303 = vld [vmem:[#allocation9 + $0x1c4] sm:$0xf]
    %v304 = vld [vmem:[#allocation9 + $0x1c8] sm:$0xff]
    %v305 = vld [vmem:[#allocation9 + $0x1d0] sm:$0xf]
    %v306 = vld [vmem:[#allocation9 + $0x1d4] sm:$0xff]
    %v307 = vld [vmem:[#allocation9 + $0x1dc] sm:$0xf]
    %v308 = vld [vmem:[#allocation9 + $0x1e0] sm:$0xff]
    %v309 = vld [vmem:[#allocation9 + $0x1e8] sm:$0xf]
    %v310 = vld [vmem:[#allocation9 + $0x1ec] sm:$0xff]
    %v311 = vld [vmem:[#allocation9 + $0x1f4] sm:$0xf]
    %v312 = vld [vmem:[#allocation9 + $0x1f8] sm:$0xff]
    %v313 = vld [vmem:[#allocation9 + $0x200] sm:$0xf]
    %v314 = vld [vmem:[#allocation9 + $0x204] sm:$0xff]
    %v315 = vld [vmem:[#allocation9 + $0x20c] sm:$0xf]
    %v316 = vld [vmem:[#allocation9 + $0x210] sm:$0xff]
    %v317 = vld [vmem:[#allocation9 + $0x218] sm:$0xf]
    %v318 = vld [vmem:[#allocation9 + $0x21c] sm:$0xff]
    %v319 = vld [vmem:[#allocation9 + $0x224] sm:$0xf]
    %v320 = vld [vmem:[#allocation9 + $0x228] sm:$0xff]
    %v321 = vld [vmem:[#allocation9 + $0x230] sm:$0xf]
    %v322 = vld [vmem:[#allocation9 + $0x234] sm:$0xff]
    %v323 = vld [vmem:[#allocation9 + $0x23c] sm:$0xf]
    %v324 = vld [vmem:[#allocation9 + $0x240] sm:$0xff]
    %v325 = vld [vmem:[#allocation9 + $0x248] sm:$0xf]
    %v326 = vld [vmem:[#allocation9 + $0x24c] sm:$0xff]
    %v327 = vld [vmem:[#allocation9 + $0x254] sm:$0xf]
    %v328 = vld [vmem:[#allocation9 + $0x258] sm:$0xff]
    %v329 = vld [vmem:[#allocation9 + $0x260] sm:$0xf]
    %v330 = vld [vmem:[#allocation9 + $0x264] sm:$0xff]
    %v331 = vld [vmem:[#allocation9 + $0x26c] sm:$0xf]
    %v332 = vld [vmem:[#allocation9 + $0x270] sm:$0xff]
    %v333 = vld [vmem:[#allocation9 + $0x278] sm:$0xf]
    %v334 = vld [vmem:[#allocation9 + $0x27c] sm:$0xff]
    %v335 = vld [vmem:[#allocation9 + $0x284] sm:$0xf]
    %v336 = vld [vmem:[#allocation9 + $0x288] sm:$0xff]
    %v337 = vld [vmem:[#allocation9 + $0x290] sm:$0xf]
    %v338 = vld [vmem:[#allocation9 + $0x294] sm:$0xff]
    %v339 = vld [vmem:[#allocation9 + $0x29c] sm:$0xf]
    %v340 = vld [vmem:[#allocation9 + $0x2a0] sm:$0xff]
    %v341 = vld [vmem:[#allocation9 + $0x2a8] sm:$0xf]
    %v342 = vld [vmem:[#allocation9 + $0x2ac] sm:$0xff]
    %v343 = vld [vmem:[#allocation9 + $0x2b4] sm:$0xf]
    %v344 = vld [vmem:[#allocation9 + $0x2b8] sm:$0xff]
    %v345 = vld [vmem:[#allocation9 + $0x2c0] sm:$0xf]
    %v346 = vld [vmem:[#allocation9 + $0x2c4] sm:$0xff]
    %v347 = vld [vmem:[#allocation9 + $0x2cc] sm:$0xf]
    %v348 = vld [vmem:[#allocation9 + $0x2d0] sm:$0xff]
    %v349 = vld [vmem:[#allocation9 + $0x2d8] sm:$0xf]
    %v350 = vld [vmem:[#allocation9 + $0x2dc] sm:$0xff]
    %v351 = vld [vmem:[#allocation9 + $0x2e4] sm:$0xf]
    %v352 = vld [vmem:[#allocation9 + $0x2e8] sm:$0xff]
    %v353 = vld [vmem:[#allocation9 + $0x2f0] sm:$0xf]
    %v354 = vld [vmem:[#allocation9 + $0x2f4] sm:$0xff]
    %v355 = vld [vmem:[#allocation9 + $0x2fc] sm:$0xf]
    %v356 = vld [vmem:[%s5] sm:$0x7]
    %v358 = vlaneseq
    %v359 = vshrl.u32 %v358, 7
    %v360 = vsub.s32 0, %v359
    %v361 = vrot.slane %v356, %v360
    %v362 = vlaneseq
    %v363 = vshrl.u32 %v362, 7
    %v364 = vsub.s32 1, %v363
    %v365 = vrot.slane %v356, %v364
    %v366 = vlaneseq
    %v367 = vshrl.u32 %v366, 7
    %v368 = vsub.s32 2, %v367
    %v369 = vrot.slane %v356, %v368
    %v501 = vunpack.c.l.b16 %v228
    %v502 = vunpack.c.h.b16 %v228
    %v503 = vunpack.c.l.b16 %v229
    %v504 = vunpack.c.l.b16 %v230
    %v505 = vunpack.c.h.b16 %v230
    %v506 = vunpack.c.l.b16 %v231
    %v507 = vunpack.c.l.b16 %v232
    %v508 = vunpack.c.h.b16 %v232
    %v509 = vunpack.c.l.b16 %v233
    %v510 = vunpack.c.l.b16 %v234
    %v511 = vunpack.c.h.b16 %v234
    %v512 = vunpack.c.l.b16 %v235
    %v513 = vunpack.c.l.b16 %v236
    %v514 = vunpack.c.h.b16 %v236
    %v515 = vunpack.c.l.b16 %v237
    %v516 = vunpack.c.l.b16 %v238
    %v517 = vunpack.c.h.b16 %v238
    %v518 = vunpack.c.l.b16 %v239
    %v519 = vunpack.c.l.b16 %v240
    %v520 = vunpack.c.h.b16 %v240
    %v521 = vunpack.c.l.b16 %v241
    %v522 = vunpack.c.l.b16 %v242
    %v523 = vunpack.c.h.b16 %v242
    %v524 = vunpack.c.l.b16 %v243
    %v525 = vunpack.c.l.b16 %v244
    %v526 = vunpack.c.h.b16 %v244
    %v527 = vunpack.c.l.b16 %v245
    %v528 = vunpack.c.l.b16 %v246
    %v529 = vunpack.c.h.b16 %v246
    %v530 = vunpack.c.l.b16 %v247
    %v531 = vunpack.c.l.b16 %v248
    %v532 = vunpack.c.h.b16 %v248
    %v533 = vunpack.c.l.b16 %v249
    %v534 = vunpack.c.l.b16 %v250
    %v535 = vunpack.c.h.b16 %v250
    %v536 = vunpack.c.l.b16 %v251
    %v537 = vunpack.c.l.b16 %v252
    %v538 = vunpack.c.h.b16 %v252
    %v539 = vunpack.c.l.b16 %v253
    %v540 = vunpack.c.l.b16 %v254
    %v541 = vunpack.c.h.b16 %v254
    %v542 = vunpack.c.l.b16 %v255
    %v543 = vunpack.c.l.b16 %v256
    %v544 = vunpack.c.h.b16 %v256
    %v545 = vunpack.c.l.b16 %v257
    %v546 = vunpack.c.l.b16 %v258
    %v547 = vunpack.c.h.b16 %v258
    %v548 = vunpack.c.l.b16 %v259
    %v549 = vunpack.c.l.b16 %v260
    %v550 = vunpack.c.h.b16 %v260
    %v551 = vunpack.c.l.b16 %v261
    %v552 = vunpack.c.l.b16 %v262
    %v553 = vunpack.c.h.b16 %v262
    %v554 = vunpack.c.l.b16 %v263
    %v555 = vunpack.c.l.b16 %v264
    %v556 = vunpack.c.h.b16 %v264
    %v557 = vunpack.c.l.b16 %v265
    %v558 = vunpack.c.l.b16 %v266
    %v559 = vunpack.c.h.b16 %v266
    %v560 = vunpack.c.l.b16 %v267
    %v561 = vunpack.c.l.b16 %v268
    %v562 = vunpack.c.h.b16 %v268
    %v563 = vunpack.c.l.b16 %v269
    %v564 = vunpack.c.l.b16 %v270
    %v565 = vunpack.c.h.b16 %v270
    %v566 = vunpack.c.l.b16 %v271
    %v567 = vunpack.c.l.b16 %v272
    %v568 = vunpack.c.h.b16 %v272
    %v569 = vunpack.c.l.b16 %v273
    %v570 = vunpack.c.l.b16 %v274
    %v571 = vunpack.c.h.b16 %v274
    %v572 = vunpack.c.l.b16 %v275
    %v573 = vunpack.c.l.b16 %v276
    %v574 = vunpack.c.h.b16 %v276
    %v575 = vunpack.c.l.b16 %v277
    %v576 = vunpack.c.l.b16 %v278
    %v577 = vunpack.c.h.b16 %v278
    %v578 = vunpack.c.l.b16 %v279
    %v579 = vunpack.c.l.b16 %v280
    %v580 = vunpack.c.h.b16 %v280
    %v581 = vunpack.c.l.b16 %v281
    %v582 = vunpack.c.l.b16 %v282
    %v583 = vunpack.c.h.b16 %v282
    %v584 = vunpack.c.l.b16 %v283
    %v585 = vunpack.c.l.b16 %v284
    %v586 = vunpack.c.h.b16 %v284
    %v587 = vunpack.c.l.b16 %v285
    %v588 = vunpack.c.l.b16 %v286
    %v589 = vunpack.c.h.b16 %v286
    %v590 = vunpack.c.l.b16 %v287
    %v591 = vunpack.c.l.b16 %v288
    %v592 = vunpack.c.h.b16 %v288
    %v593 = vunpack.c.l.b16 %v289
    %v594 = vunpack.c.l.b16 %v290
    %v595 = vunpack.c.h.b16 %v290
    %v596 = vunpack.c.l.b16 %v291
    %v597 = vunpack.c.l.b16 %v292
    %v598 = vunpack.c.h.b16 %v292
    %v599 = vunpack.c.l.b16 %v293
    %v600 = vunpack.c.l.b16 %v294
    %v601 = vunpack.c.h.b16 %v294
    %v602 = vunpack.c.l.b16 %v295
    %v603 = vunpack.c.l.b16 %v296
    %v604 = vunpack.c.h.b16 %v296
    %v605 = vunpack.c.l.b16 %v297
    %v606 = vunpack.c.l.b16 %v298
    %v607 = vunpack.c.h.b16 %v298
    %v608 = vunpack.c.l.b16 %v299
    %v609 = vunpack.c.l.b16 %v300
    %v610 = vunpack.c.h.b16 %v300
    %v611 = vunpack.c.l.b16 %v301
    %v612 = vunpack.c.l.b16 %v302
    %v613 = vunpack.c.h.b16 %v302
    %v614 = vunpack.c.l.b16 %v303
    %v615 = vunpack.c.l.b16 %v304
    %v616 = vunpack.c.h.b16 %v304
    %v617 = vunpack.c.l.b16 %v305
    %v618 = vunpack.c.l.b16 %v306
    %v619 = vunpack.c.h.b16 %v306
    %v620 = vunpack.c.l.b16 %v307
    %v621 = vunpack.c.l.b16 %v308
    %v622 = vunpack.c.h.b16 %v308
    %v623 = vunpack.c.l.b16 %v309
    %v624 = vunpack.c.l.b16 %v310
    %v625 = vunpack.c.h.b16 %v310
    %v626 = vunpack.c.l.b16 %v311
    %v627 = vunpack.c.l.b16 %v312
    %v628 = vunpack.c.h.b16 %v312
    %v629 = vunpack.c.l.b16 %v313
    %v630 = vunpack.c.l.b16 %v314
    %v631 = vunpack.c.h.b16 %v314
    %v632 = vunpack.c.l.b16 %v315
    %v633 = vunpack.c.l.b16 %v316
    %v634 = vunpack.c.h.b16 %v316
    %v635 = vunpack.c.l.b16 %v317
    %v636 = vunpack.c.l.b16 %v318
    %v637 = vunpack.c.h.b16 %v318
    %v638 = vunpack.c.l.b16 %v319
    %v639 = vunpack.c.l.b16 %v320
    %v640 = vunpack.c.h.b16 %v320
    %v641 = vunpack.c.l.b16 %v321
    %v642 = vunpack.c.l.b16 %v322
    %v643 = vunpack.c.h.b16 %v322
    %v644 = vunpack.c.l.b16 %v323
    %v645 = vunpack.c.l.b16 %v324
    %v646 = vunpack.c.h.b16 %v324
    %v647 = vunpack.c.l.b16 %v325
    %v648 = vunpack.c.l.b16 %v326
    %v649 = vunpack.c.h.b16 %v326
    %v650 = vunpack.c.l.b16 %v327
    %v651 = vunpack.c.l.b16 %v328
    %v652 = vunpack.c.h.b16 %v328
    %v653 = vunpack.c.l.b16 %v329
    %v654 = vunpack.c.l.b16 %v330
    %v655 = vunpack.c.h.b16 %v330
    %v656 = vunpack.c.l.b16 %v331
    %v657 = vunpack.c.l.b16 %v332
    %v658 = vunpack.c.h.b16 %v332
    %v659 = vunpack.c.l.b16 %v333
    %v660 = vunpack.c.l.b16 %v334
    %v661 = vunpack.c.h.b16 %v334
    %v662 = vunpack.c.l.b16 %v335
    %v663 = vunpack.c.l.b16 %v336
    %v664 = vunpack.c.h.b16 %v336
    %v665 = vunpack.c.l.b16 %v337
    %v666 = vunpack.c.l.b16 %v338
    %v667 = vunpack.c.h.b16 %v338
    %v668 = vunpack.c.l.b16 %v339
    %v669 = vunpack.c.l.b16 %v340
    %v670 = vunpack.c.h.b16 %v340
    %v671 = vunpack.c.l.b16 %v341
    %v672 = vunpack.c.l.b16 %v342
    %v673 = vunpack.c.h.b16 %v342
    %v674 = vunpack.c.l.b16 %v343
    %v675 = vunpack.c.l.b16 %v344
    %v676 = vunpack.c.h.b16 %v344
    %v677 = vunpack.c.l.b16 %v345
    %v678 = vunpack.c.l.b16 %v346
    %v679 = vunpack.c.h.b16 %v346
    %v680 = vunpack.c.l.b16 %v347
    %v681 = vunpack.c.l.b16 %v348
    %v682 = vunpack.c.h.b16 %v348
    %v683 = vunpack.c.l.b16 %v349
    %v684 = vunpack.c.l.b16 %v350
    %v685 = vunpack.c.h.b16 %v350
    %v686 = vunpack.c.l.b16 %v351
    %v687 = vunpack.c.l.b16 %v352
    %v688 = vunpack.c.h.b16 %v352
    %v689 = vunpack.c.l.b16 %v353
    %v690 = vunpack.c.l.b16 %v354
    %v691 = vunpack.c.h.b16 %v354
    %v692 = vunpack.c.l.b16 %v355
    %v693 = vpack.c.b16 %v504, %v501
    %v694 = vpack.c.b16 %v505, %v502
    %v695 = vpack.c.b16 %v506, %v503
    %v696 = vpack.c.b16 %v510, %v507
    %v697 = vpack.c.b16 %v511, %v508
    %v698 = vpack.c.b16 %v512, %v509
    %v699 = vpack.c.b16 %v516, %v513
    %v700 = vpack.c.b16 %v517, %v514
    %v701 = vpack.c.b16 %v518, %v515
    %v702 = vpack.c.b16 %v522, %v519
    %v703 = vpack.c.b16 %v523, %v520
    %v704 = vpack.c.b16 %v524, %v521
    %v705 = vpack.c.b16 %v528, %v525
    %v706 = vpack.c.b16 %v529, %v526
    %v707 = vpack.c.b16 %v530, %v527
    %v708 = vpack.c.b16 %v534, %v531
    %v709 = vpack.c.b16 %v535, %v532
    %v710 = vpack.c.b16 %v536, %v533
    %v711 = vpack.c.b16 %v540, %v537
    %v712 = vpack.c.b16 %v541, %v538
    %v713 = vpack.c.b16 %v542, %v539
    %v714 = vpack.c.b16 %v546, %v543
    %v715 = vpack.c.b16 %v547, %v544
    %v716 = vpack.c.b16 %v548, %v545
    %v717 = vpack.c.b16 %v552, %v549
    %v718 = vpack.c.b16 %v553, %v550
    %v719 = vpack.c.b16 %v554, %v551
    %v720 = vpack.c.b16 %v558, %v555
    %v721 = vpack.c.b16 %v559, %v556
    %v722 = vpack.c.b16 %v560, %v557
    %v723 = vpack.c.b16 %v564, %v561
    %v724 = vpack.c.b16 %v565, %v562
    %v725 = vpack.c.b16 %v566, %v563
    %v726 = vpack.c.b16 %v570, %v567
    %v727 = vpack.c.b16 %v571, %v568
    %v728 = vpack.c.b16 %v572, %v569
    %v729 = vpack.c.b16 %v576, %v573
    %v730 = vpack.c.b16 %v577, %v574
    %v731 = vpack.c.b16 %v578, %v575
    %v732 = vpack.c.b16 %v582, %v579
    %v733 = vpack.c.b16 %v583, %v580
    %v734 = vpack.c.b16 %v584, %v581
    %v735 = vpack.c.b16 %v588, %v585
    %v736 = vpack.c.b16 %v589, %v586
    %v737 = vpack.c.b16 %v590, %v587
    %v738 = vpack.c.b16 %v594, %v591
    %v739 = vpack.c.b16 %v595, %v592
    %v740 = vpack.c.b16 %v596, %v593
    %v741 = vpack.c.b16 %v600, %v597
    %v742 = vpack.c.b16 %v601, %v598
    %v743 = vpack.c.b16 %v602, %v599
    %v744 = vpack.c.b16 %v606, %v603
    %v745 = vpack.c.b16 %v607, %v604
    %v746 = vpack.c.b16 %v608, %v605
    %v747 = vpack.c.b16 %v612, %v609
    %v748 = vpack.c.b16 %v613, %v610
    %v749 = vpack.c.b16 %v614, %v611
    %v750 = vpack.c.b16 %v618, %v615
    %v751 = vpack.c.b16 %v619, %v616
    %v752 = vpack.c.b16 %v620, %v617
    %v753 = vpack.c.b16 %v624, %v621
    %v754 = vpack.c.b16 %v625, %v622
    %v755 = vpack.c.b16 %v626, %v623
    %v756 = vpack.c.b16 %v630, %v627
    %v757 = vpack.c.b16 %v631, %v628
    %v758 = vpack.c.b16 %v632, %v629
    %v759 = vpack.c.b16 %v636, %v633
    %v760 = vpack.c.b16 %v637, %v634
    %v761 = vpack.c.b16 %v638, %v635
    %v762 = vpack.c.b16 %v642, %v639
    %v763 = vpack.c.b16 %v643, %v640
    %v764 = vpack.c.b16 %v644, %v641
    %v765 = vpack.c.b16 %v648, %v645
    %v766 = vpack.c.b16 %v649, %v646
    %v767 = vpack.c.b16 %v650, %v647
    %v768 = vpack.c.b16 %v654, %v651
    %v769 = vpack.c.b16 %v655, %v652
    %v770 = vpack.c.b16 %v656, %v653
    %v771 = vpack.c.b16 %v660, %v657
    %v772 = vpack.c.b16 %v661, %v658
    %v773 = vpack.c.b16 %v662, %v659
    %v774 = vpack.c.b16 %v666, %v663
    %v775 = vpack.c.b16 %v667, %v664
    %v776 = vpack.c.b16 %v668, %v665
    %v777 = vpack.c.b16 %v672, %v669
    %v778 = vpack.c.b16 %v673, %v670
    %v779 = vpack.c.b16 %v674, %v671
    %v780 = vpack.c.b16 %v678, %v675
    %v781 = vpack.c.b16 %v679, %v676
    %v782 = vpack.c.b16 %v680, %v677
    %v783 = vpack.c.b16 %v684, %v681
    %v784 = vpack.c.b16 %v685, %v682
    %v785 = vpack.c.b16 %v686, %v683
    %v786 = vpack.c.b16 %v690, %v687
    %v787 = vpack.c.b16 %v691, %v688
    %v788 = vpack.c.b16 %v692, %v689
    %885 = vmatprep.subr.bf16.mxu0 %v694
    %886 = vmatpush1.bf16.msra.mxu0 %v693
    %887 = vmatprep.subr.bf16.mxu0 %v697
    %888 = vmatpush1.bf16.msra.mxu0 %v696
    %889 = vmatprep.subr.bf16.mxu0 %v700
    %890 = vmatpush1.bf16.msra.mxu0 %v699
    %891 = vmatprep.subr.bf16.mxu0 %v703
    %892 = vmatpush1.bf16.msra.mxu0 %v702
    %893 = vmatprep.subr.bf16.mxu0 %v706
    %894 = vmatpush1.bf16.msra.mxu0 %v705
    %895 = vmatprep.subr.bf16.mxu0 %v709
    %896 = vmatpush1.bf16.msra.mxu0 %v708
    %897 = vmatprep.subr.bf16.mxu0 %v712
    %898 = vmatpush1.bf16.msra.mxu0 %v711
    %899 = vmatprep.subr.bf16.mxu0 %v715
    %900 = vmatpush1.bf16.msra.mxu0 %v714
    %901 = vmatprep.subr.bf16.mxu0 %v718
    %902 = vmatpush1.bf16.msra.mxu0 %v717
    %903 = vmatprep.subr.bf16.mxu0 %v721
    %904 = vmatpush1.bf16.msra.mxu0 %v720
    %905 = vmatprep.subr.bf16.mxu0 %v724
    %906 = vmatpush1.bf16.msra.mxu0 %v723
    %907 = vmatprep.subr.bf16.mxu0 %v727
    %908 = vmatpush1.bf16.msra.mxu0 %v726
    %909 = vmatprep.subr.bf16.mxu0 %v730
    %910 = vmatpush1.bf16.msra.mxu0 %v729
    %911 = vmatprep.subr.bf16.mxu0 %v733
    %912 = vmatpush1.bf16.msra.mxu0 %v732
    %913 = vmatprep.subr.bf16.mxu0 %v736
    %914 = vmatpush1.bf16.msra.mxu0 %v735
    %915 = vmatprep.subr.bf16.mxu0 %v739
    %916 = vmatpush1.bf16.msra.mxu0 %v738
    %917 = vmatprep.mubr.bf16.mxu0 %v225
    %918 = vmatmul.mubr.bf16.gmra.mrb[0].mxu0 %v224
    %v919 = vpop.f32.mrb[0].mxu0
    %v920 = vadd.f32 %v361, %v919
    %v921 = vpop.f32.mrb[0].mxu0
    %v922 = vadd.f32 %v365, %v921
    %v923 = vpop.f32.mrb[0].mxu0
    %v924 = vpop.f32.mrb[0].mxu0
    %925 = vdwg.mxu0
    %926 = vmatprep.subr.bf16.mxu0 %v742
    %927 = vmatpush1.bf16.msra.mxu0 %v741
    %928 = vmatprep.subr.bf16.mxu0 %v745
    %929 = vmatpush1.bf16.msra.mxu0 %v744
    %930 = vmatprep.subr.bf16.mxu0 %v748
    %931 = vmatpush1.bf16.msra.mxu0 %v747
    %932 = vmatprep.subr.bf16.mxu0 %v751
    %933 = vmatpush1.bf16.msra.mxu0 %v750
    %934 = vmatprep.subr.bf16.mxu0 %v754
    %935 = vmatpush1.bf16.msra.mxu0 %v753
    %936 = vmatprep.subr.bf16.mxu0 %v757
    %937 = vmatpush1.bf16.msra.mxu0 %v756
    %938 = vmatprep.subr.bf16.mxu0 %v760
    %939 = vmatpush1.bf16.msra.mxu0 %v759
    %940 = vmatprep.subr.bf16.mxu0 %v763
    %941 = vmatpush1.bf16.msra.mxu0 %v762
    %942 = vmatprep.subr.bf16.mxu0 %v766
    %943 = vmatpush1.bf16.msra.mxu0 %v765
    %944 = vmatprep.subr.bf16.mxu0 %v769
    %945 = vmatpush1.bf16.msra.mxu0 %v768
    %946 = vmatprep.subr.bf16.mxu0 %v772
    %947 = vmatpush1.bf16.msra.mxu0 %v771
    %948 = vmatprep.subr.bf16.mxu0 %v775
    %949 = vmatpush1.bf16.msra.mxu0 %v774
    %950 = vmatprep.subr.bf16.mxu0 %v778
    %951 = vmatpush1.bf16.msra.mxu0 %v777
    %952 = vmatprep.subr.bf16.mxu0 %v781
    %953 = vmatpush1.bf16.msra.mxu0 %v780
    %954 = vmatprep.subr.bf16.mxu0 %v784
    %955 = vmatpush1.bf16.msra.mxu0 %v783
    %956 = vmatprep.subr.bf16.mxu0 %v787
    %957 = vmatpush1.bf16.msra.mxu0 %v786
    %958 = vmatprep.mubr.bf16.mxu0 %v227
    %959 = vmatmul.mubr.bf16.gmra.mrb[0].mxu0 %v226
    %v960 = vpop.f32.mrb[0].mxu0
    %v961 = vadd.f32 %v920, %v960
    %v962 = vpop.f32.mrb[0].mxu0
    %v963 = vadd.f32 %v922, %v962
    %v964 = vpop.f32.mrb[0].mxu0
    %v965 = vpop.f32.mrb[0].mxu0
    %966 = vdwg.mxu0
    %967 = vmatprep.subr.bf16.mxu0 0
    %968 = vmatpush1.bf16.msra.mxu0 %v695
    %969 = vmatprep.subr.bf16.mxu0 0
    %970 = vmatpush1.bf16.msra.mxu0 %v698
    %971 = vmatprep.subr.bf16.mxu0 0
    %972 = vmatpush1.bf16.msra.mxu0 %v701
    %973 = vmatprep.subr.bf16.mxu0 0
    %974 = vmatpush1.bf16.msra.mxu0 %v704
    %975 = vmatprep.subr.bf16.mxu0 0
    %976 = vmatpush1.bf16.msra.mxu0 %v707
    %977 = vmatprep.subr.bf16.mxu0 0
    %978 = vmatpush1.bf16.msra.mxu0 %v710
    %979 = vmatprep.subr.bf16.mxu0 0
    %980 = vmatpush1.bf16.msra.mxu0 %v713
    %981 = vmatprep.subr.bf16.mxu0 0
    %982 = vmatpush1.bf16.msra.mxu0 %v716
    %983 = vmatprep.subr.bf16.mxu0 0
    %984 = vmatpush1.bf16.msra.mxu0 %v719
    %985 = vmatprep.subr.bf16.mxu0 0
    %986 = vmatpush1.bf16.msra.mxu0 %v722
    %987 = vmatprep.subr.bf16.mxu0 0
    %988 = vmatpush1.bf16.msra.mxu0 %v725
    %989 = vmatprep.subr.bf16.mxu0 0
    %990 = vmatpush1.bf16.msra.mxu0 %v728
    %991 = vmatprep.subr.bf16.mxu0 0
    %992 = vmatpush1.bf16.msra.mxu0 %v731
    %993 = vmatprep.subr.bf16.mxu0 0
    %994 = vmatpush1.bf16.msra.mxu0 %v734
    %995 = vmatprep.subr.bf16.mxu0 0
    %996 = vmatpush1.bf16.msra.mxu0 %v737
    %997 = vmatprep.subr.bf16.mxu0 0
    %998 = vmatpush1.bf16.msra.mxu0 %v740
    %999 = vmatprep.mubr.bf16.mxu0 %v225
    %1000 = vmatmul.mubr.bf16.gmra.mrb[0].mxu0 %v224
    %v1001 = vpop.f32.mrb[0].mxu0
    %v1002 = vadd.f32 %v369, %v1001
    %v1003 = vpop.f32.mrb[0].mxu0
    %v1004 = vpop.f32.mrb[0].mxu0
    %v1005 = vpop.f32.mrb[0].mxu0
    %1006 = vdwg.mxu0
    %1007 = vmatprep.subr.bf16.mxu0 0
    %1008 = vmatpush1.bf16.msra.mxu0 %v743
    %1009 = vmatprep.subr.bf16.mxu0 0
    %1010 = vmatpush1.bf16.msra.mxu0 %v746
    %1011 = vmatprep.subr.bf16.mxu0 0
    %1012 = vmatpush1.bf16.msra.mxu0 %v749
    %1013 = vmatprep.subr.bf16.mxu0 0
    %1014 = vmatpush1.bf16.msra.mxu0 %v752
    %1015 = vmatprep.subr.bf16.mxu0 0
    %1016 = vmatpush1.bf16.msra.mxu0 %v755
    %1017 = vmatprep.subr.bf16.mxu0 0
    %1018 = vmatpush1.bf16.msra.mxu0 %v758
    %1019 = vmatprep.subr.bf16.mxu0 0
    %1020 = vmatpush1.bf16.msra.mxu0 %v761
    %1021 = vmatprep.subr.bf16.mxu0 0
    %1022 = vmatpush1.bf16.msra.mxu0 %v764
    %1023 = vmatprep.subr.bf16.mxu0 0
    %1024 = vmatpush1.bf16.msra.mxu0 %v767
    %1025 = vmatprep.subr.bf16.mxu0 0
    %1026 = vmatpush1.bf16.msra.mxu0 %v770
    %1027 = vmatprep.subr.bf16.mxu0 0
    %1028 = vmatpush1.bf16.msra.mxu0 %v773
    %1029 = vmatprep.subr.bf16.mxu0 0
    %1030 = vmatpush1.bf16.msra.mxu0 %v776
    %1031 = vmatprep.subr.bf16.mxu0 0
    %1032 = vmatpush1.bf16.msra.mxu0 %v779
    %1033 = vmatprep.subr.bf16.mxu0 0
    %1034 = vmatpush1.bf16.msra.mxu0 %v782
    %1035 = vmatprep.subr.bf16.mxu0 0
    %1036 = vmatpush1.bf16.msra.mxu0 %v785
    %1037 = vmatprep.subr.bf16.mxu0 0
    %1038 = vmatpush1.bf16.msra.mxu0 %v788
    %1039 = vmatprep.mubr.bf16.mxu0 %v227
    %1040 = vmatmul.mubr.bf16.gmra.mrb[0].mxu0 %v226
    %v1041 = vpop.f32.mrb[0].mxu0
    %v1042 = vadd.f32 %v1002, %v1041
    %v1043 = vpop.f32.mrb[0].mxu0
    %v1044 = vpop.f32.mrb[0].mxu0
    %v1045 = vpop.f32.mrb[0].mxu0
    %1046 = vdwg.mxu0
    %v1047 = vmax.f32 %v961, 0.0
    %v1048 = vmax.f32 %v963, 0.0
    %v1049 = vmax.f32 %v1042, 0.0
    %v1050 = vpack.c.bf16 %v1047, %v1047
    %v1051 = vpack.c.bf16 %v1048, %v1048
    %v1052 = vpack.c.bf16 %v1049, %v1049
    %v1053 = vld [vmem:[#allocation10] sm:$0xff]
    %v1054 = vld [vmem:[#allocation10 + $0x8] sm:$0xff]
    %v1055 = vld [vmem:[#allocation10 + $0x10] sm:$0xff]
    %v1056 = vld [vmem:[#allocation10 + $0x18] sm:$0xff]
    %v1057 = vld [vmem:[#allocation10 + $0x20] sm:$0xff]
    %v1058 = vld [vmem:[#allocation10 + $0x28] sm:$0xff]
    %v1059 = vld [vmem:[#allocation10 + $0x30] sm:$0xff]
    %v1060 = vld [vmem:[#allocation10 + $0x38] sm:$0xff]
    %v1061 = vld [vmem:[#allocation10 + $0x40] sm:$0xff]
    %v1062 = vld [vmem:[#allocation10 + $0x48] sm:$0xff]
    %v1063 = vld [vmem:[#allocation10 + $0x50] sm:$0xff]
    %v1064 = vld [vmem:[#allocation10 + $0x58] sm:$0xff]
    %v1065 = vld [vmem:[#allocation10 + $0x60] sm:$0xff]
    %v1066 = vld [vmem:[#allocation10 + $0x68] sm:$0xff]
    %v1067 = vld [vmem:[#allocation10 + $0x70] sm:$0xff]
    %v1068 = vld [vmem:[#allocation10 + $0x78] sm:$0xff]
    %v1069 = vld [vmem:[#allocation10 + $0x80] sm:$0xff]
    %v1070 = vld [vmem:[#allocation10 + $0x88] sm:$0xff]
    %v1071 = vld [vmem:[#allocation10 + $0x90] sm:$0xff]
    %v1072 = vld [vmem:[#allocation10 + $0x98] sm:$0xff]
    %v1073 = vld [vmem:[#allocation10 + $0xa0] sm:$0xff]
    %v1074 = vld [vmem:[#allocation10 + $0xa8] sm:$0xff]
    %v1075 = vld [vmem:[#allocation10 + $0xb0] sm:$0xff]
    %v1076 = vld [vmem:[#allocation10 + $0xb8] sm:$0xff]
    %v1077 = vld [vmem:[#allocation10 + $0xc0] sm:$0xff]
    %v1078 = vld [vmem:[#allocation10 + $0xc8] sm:$0xff]
    %v1079 = vld [vmem:[#allocation10 + $0xd0] sm:$0xff]
    %v1080 = vld [vmem:[#allocation10 + $0xd8] sm:$0xff]
    %v1081 = vld [vmem:[#allocation10 + $0xe0] sm:$0xff]
    %v1082 = vld [vmem:[#allocation10 + $0xe8] sm:$0xff]
    %v1083 = vld [vmem:[#allocation10 + $0xf0] sm:$0xff]
    %v1084 = vld [vmem:[#allocation10 + $0xf8] sm:$0xff]
    %v1085 = vld [vmem:[#allocation10 + $0x100] sm:$0xff]
    %v1086 = vld [vmem:[#allocation10 + $0x108] sm:$0xff]
    %v1087 = vld [vmem:[#allocation10 + $0x110] sm:$0xff]
    %v1088 = vld [vmem:[#allocation10 + $0x118] sm:$0xff]
    %v1089 = vld [vmem:[#allocation10 + $0x120] sm:$0xff]
    %v1090 = vld [vmem:[#allocation10 + $0x128] sm:$0xff]
    %v1091 = vld [vmem:[#allocation10 + $0x130] sm:$0xff]
    %v1092 = vld [vmem:[#allocation10 + $0x138] sm:$0xff]
    %v1093 = vld [vmem:[#allocation10 + $0x140] sm:$0xff]
    %v1094 = vld [vmem:[#allocation10 + $0x148] sm:$0xff]
    %v1095 = vld [vmem:[#allocation10 + $0x150] sm:$0xff]
    %v1096 = vld [vmem:[#allocation10 + $0x158] sm:$0xff]
    %v1097 = vld [vmem:[#allocation10 + $0x160] sm:$0xff]
    %v1098 = vld [vmem:[#allocation10 + $0x168] sm:$0xff]
    %v1099 = vld [vmem:[#allocation10 + $0x170] sm:$0xff]
    %v1100 = vld [vmem:[#allocation10 + $0x178] sm:$0xff]
    %v1101 = vld [vmem:[%s7] sm:$0x3]
    %v1103 = vlaneseq
    %v1104 = vshrl.u32 %v1103, 7
    %v1105 = vsub.s32 0, %v1104
    %v1106 = vrot.slane %v1101, %v1105
    %v1107 = vlaneseq
    %v1108 = vshrl.u32 %v1107, 7
    %v1109 = vsub.s32 1, %v1108
    %v1110 = vrot.slane %v1101, %v1109
    %v1161 = vunpack.c.l.b16 %v1053
    %v1162 = vunpack.c.h.b16 %v1053
    %v1163 = vunpack.c.l.b16 %v1054
    %v1164 = vunpack.c.h.b16 %v1054
    %v1165 = vunpack.c.l.b16 %v1055
    %v1166 = vunpack.c.h.b16 %v1055
    %v1167 = vunpack.c.l.b16 %v1056
    %v1168 = vunpack.c.h.b16 %v1056
    %v1169 = vunpack.c.l.b16 %v1057
    %v1170 = vunpack.c.h.b16 %v1057
    %v1171 = vunpack.c.l.b16 %v1058
    %v1172 = vunpack.c.h.b16 %v1058
    %v1173 = vunpack.c.l.b16 %v1059
    %v1174 = vunpack.c.h.b16 %v1059
    %v1175 = vunpack.c.l.b16 %v1060
    %v1176 = vunpack.c.h.b16 %v1060
    %v1177 = vunpack.c.l.b16 %v1061
    %v1178 = vunpack.c.h.b16 %v1061
    %v1179 = vunpack.c.l.b16 %v1062
    %v1180 = vunpack.c.h.b16 %v1062
    %v1181 = vunpack.c.l.b16 %v1063
    %v1182 = vunpack.c.h.b16 %v1063
    %v1183 = vunpack.c.l.b16 %v1064
    %v1184 = vunpack.c.h.b16 %v1064
    %v1185 = vunpack.c.l.b16 %v1065
    %v1186 = vunpack.c.h.b16 %v1065
    %v1187 = vunpack.c.l.b16 %v1066
    %v1188 = vunpack.c.h.b16 %v1066
    %v1189 = vunpack.c.l.b16 %v1067
    %v1190 = vunpack.c.h.b16 %v1067
    %v1191 = vunpack.c.l.b16 %v1068
    %v1192 = vunpack.c.h.b16 %v1068
    %v1193 = vunpack.c.l.b16 %v1069
    %v1194 = vunpack.c.h.b16 %v1069
    %v1195 = vunpack.c.l.b16 %v1070
    %v1196 = vunpack.c.h.b16 %v1070
    %v1197 = vunpack.c.l.b16 %v1071
    %v1198 = vunpack.c.h.b16 %v1071
    %v1199 = vunpack.c.l.b16 %v1072
    %v1200 = vunpack.c.h.b16 %v1072
    %v1201 = vunpack.c.l.b16 %v1073
    %v1202 = vunpack.c.h.b16 %v1073
    %v1203 = vunpack.c.l.b16 %v1074
    %v1204 = vunpack.c.h.b16 %v1074
    %v1205 = vunpack.c.l.b16 %v1075
    %v1206 = vunpack.c.h.b16 %v1075
    %v1207 = vunpack.c.l.b16 %v1076
    %v1208 = vunpack.c.h.b16 %v1076
    %v1209 = vunpack.c.l.b16 %v1077
    %v1210 = vunpack.c.h.b16 %v1077
    %v1211 = vunpack.c.l.b16 %v1078
    %v1212 = vunpack.c.h.b16 %v1078
    %v1213 = vunpack.c.l.b16 %v1079
    %v1214 = vunpack.c.h.b16 %v1079
    %v1215 = vunpack.c.l.b16 %v1080
    %v1216 = vunpack.c.h.b16 %v1080
    %v1217 = vunpack.c.l.b16 %v1081
    %v1218 = vunpack.c.h.b16 %v1081
    %v1219 = vunpack.c.l.b16 %v1082
    %v1220 = vunpack.c.h.b16 %v1082
    %v1221 = vunpack.c.l.b16 %v1083
    %v1222 = vunpack.c.h.b16 %v1083
    %v1223 = vunpack.c.l.b16 %v1084
    %v1224 = vunpack.c.h.b16 %v1084
    %v1225 = vunpack.c.l.b16 %v1085
    %v1226 = vunpack.c.h.b16 %v1085
    %v1227 = vunpack.c.l.b16 %v1086
    %v1228 = vunpack.c.h.b16 %v1086
    %v1229 = vunpack.c.l.b16 %v1087
    %v1230 = vunpack.c.h.b16 %v1087
    %v1231 = vunpack.c.l.b16 %v1088
    %v1232 = vunpack.c.h.b16 %v1088
    %v1233 = vunpack.c.l.b16 %v1089
    %v1234 = vunpack.c.h.b16 %v1089
    %v1235 = vunpack.c.l.b16 %v1090
    %v1236 = vunpack.c.h.b16 %v1090
    %v1237 = vunpack.c.l.b16 %v1091
    %v1238 = vunpack.c.h.b16 %v1091
    %v1239 = vunpack.c.l.b16 %v1092
    %v1240 = vunpack.c.h.b16 %v1092
    %v1241 = vunpack.c.l.b16 %v1093
    %v1242 = vunpack.c.h.b16 %v1093
    %v1243 = vunpack.c.l.b16 %v1094
    %v1244 = vunpack.c.h.b16 %v1094
    %v1245 = vunpack.c.l.b16 %v1095
    %v1246 = vunpack.c.h.b16 %v1095
    %v1247 = vunpack.c.l.b16 %v1096
    %v1248 = vunpack.c.h.b16 %v1096
    %v1249 = vunpack.c.l.b16 %v1097
    %v1250 = vunpack.c.h.b16 %v1097
    %v1251 = vunpack.c.l.b16 %v1098
    %v1252 = vunpack.c.h.b16 %v1098
    %v1253 = vunpack.c.l.b16 %v1099
    %v1254 = vunpack.c.h.b16 %v1099
    %v1255 = vunpack.c.l.b16 %v1100
    %v1256 = vunpack.c.h.b16 %v1100
    %v1257 = vpack.c.b16 %v1163, %v1161
    %v1258 = vpack.c.b16 %v1164, %v1162
    %v1259 = vpack.c.b16 %v1167, %v1165
    %v1260 = vpack.c.b16 %v1168, %v1166
    %v1261 = vpack.c.b16 %v1171, %v1169
    %v1262 = vpack.c.b16 %v1172, %v1170
    %v1263 = vpack.c.b16 %v1175, %v1173
    %v1264 = vpack.c.b16 %v1176, %v1174
    %v1265 = vpack.c.b16 %v1179, %v1177
    %v1266 = vpack.c.b16 %v1180, %v1178
    %v1267 = vpack.c.b16 %v1183, %v1181
    %v1268 = vpack.c.b16 %v1184, %v1182
    %v1269 = vpack.c.b16 %v1187, %v1185
    %v1270 = vpack.c.b16 %v1188, %v1186
    %v1271 = vpack.c.b16 %v1191, %v1189
    %v1272 = vpack.c.b16 %v1192, %v1190
    %v1273 = vpack.c.b16 %v1195, %v1193
    %v1274 = vpack.c.b16 %v1196, %v1194
    %v1275 = vpack.c.b16 %v1199, %v1197
    %v1276 = vpack.c.b16 %v1200, %v1198
    %v1277 = vpack.c.b16 %v1203, %v1201
    %v1278 = vpack.c.b16 %v1204, %v1202
    %v1279 = vpack.c.b16 %v1207, %v1205
    %v1280 = vpack.c.b16 %v1208, %v1206
    %v1281 = vpack.c.b16 %v1211, %v1209
    %v1282 = vpack.c.b16 %v1212, %v1210
    %v1283 = vpack.c.b16 %v1215, %v1213
    %v1284 = vpack.c.b16 %v1216, %v1214
    %v1285 = vpack.c.b16 %v1219, %v1217
    %v1286 = vpack.c.b16 %v1220, %v1218
    %v1287 = vpack.c.b16 %v1223, %v1221
    %v1288 = vpack.c.b16 %v1224, %v1222
    %v1289 = vpack.c.b16 %v1227, %v1225
    %v1290 = vpack.c.b16 %v1228, %v1226
    %v1291 = vpack.c.b16 %v1231, %v1229
    %v1292 = vpack.c.b16 %v1232, %v1230
    %v1293 = vpack.c.b16 %v1235, %v1233
    %v1294 = vpack.c.b16 %v1236, %v1234
    %v1295 = vpack.c.b16 %v1239, %v1237
    %v1296 = vpack.c.b16 %v1240, %v1238
    %v1297 = vpack.c.b16 %v1243, %v1241
    %v1298 = vpack.c.b16 %v1244, %v1242
    %v1299 = vpack.c.b16 %v1247, %v1245
    %v1300 = vpack.c.b16 %v1248, %v1246
    %v1301 = vpack.c.b16 %v1251, %v1249
    %v1302 = vpack.c.b16 %v1252, %v1250
    %v1303 = vpack.c.b16 %v1255, %v1253
    %v1304 = vpack.c.b16 %v1256, %v1254
    %1353 = vmatprep.subr.bf16.mxu0 %v1258
    %1354 = vmatpush1.bf16.msra.mxu0 %v1257
    %1355 = vmatprep.subr.bf16.mxu0 %v1260
    %1356 = vmatpush1.bf16.msra.mxu0 %v1259
    %1357 = vmatprep.subr.bf16.mxu0 %v1262
    %1358 = vmatpush1.bf16.msra.mxu0 %v1261
    %1359 = vmatprep.subr.bf16.mxu0 %v1264
    %1360 = vmatpush1.bf16.msra.mxu0 %v1263
    %1361 = vmatprep.subr.bf16.mxu0 %v1266
    %1362 = vmatpush1.bf16.msra.mxu0 %v1265
    %1363 = vmatprep.subr.bf16.mxu0 %v1268
    %1364 = vmatpush1.bf16.msra.mxu0 %v1267
    %1365 = vmatprep.subr.bf16.mxu0 %v1270
    %1366 = vmatpush1.bf16.msra.mxu0 %v1269
    %1367 = vmatprep.subr.bf16.mxu0 %v1272
    %1368 = vmatpush1.bf16.msra.mxu0 %v1271
    %1369 = vmatprep.subr.bf16.mxu0 %v1274
    %1370 = vmatpush1.bf16.msra.mxu0 %v1273
    %1371 = vmatprep.subr.bf16.mxu0 %v1276
    %1372 = vmatpush1.bf16.msra.mxu0 %v1275
    %1373 = vmatprep.subr.bf16.mxu0 %v1278
    %1374 = vmatpush1.bf16.msra.mxu0 %v1277
    %1375 = vmatprep.subr.bf16.mxu0 %v1280
    %1376 = vmatpush1.bf16.msra.mxu0 %v1279
    %1377 = vmatprep.subr.bf16.mxu0 %v1282
    %1378 = vmatpush1.bf16.msra.mxu0 %v1281
    %1379 = vmatprep.subr.bf16.mxu0 %v1284
    %1380 = vmatpush1.bf16.msra.mxu0 %v1283
    %1381 = vmatprep.subr.bf16.mxu0 %v1286
    %1382 = vmatpush1.bf16.msra.mxu0 %v1285
    %1383 = vmatprep.subr.bf16.mxu0 %v1288
    %1384 = vmatpush1.bf16.msra.mxu0 %v1287
    %1385 = vmatprep.mubr.bf16.mxu0 %v1051
    %1386 = vmatmul.mubr.bf16.gmra.mrb[0].mxu0 %v1050
    %v1387 = vpop.f32.mrb[0].mxu0
    %v1388 = vadd.f32 %v1106, %v1387
    %v1389 = vpop.f32.mrb[0].mxu0
    %v1390 = vadd.f32 %v1110, %v1389
    %v1391 = vpop.f32.mrb[0].mxu0
    %v1392 = vpop.f32.mrb[0].mxu0
    %1393 = vdwg.mxu0
    %1394 = vmatprep.subr.bf16.mxu0 %v1290
    %1395 = vmatpush1.bf16.msra.mxu0 %v1289
    %1396 = vmatprep.subr.bf16.mxu0 %v1292
    %1397 = vmatpush1.bf16.msra.mxu0 %v1291
    %1398 = vmatprep.subr.bf16.mxu0 %v1294
    %1399 = vmatpush1.bf16.msra.mxu0 %v1293
    %1400 = vmatprep.subr.bf16.mxu0 %v1296
    %1401 = vmatpush1.bf16.msra.mxu0 %v1295
    %1402 = vmatprep.subr.bf16.mxu0 %v1298
    %1403 = vmatpush1.bf16.msra.mxu0 %v1297
    %1404 = vmatprep.subr.bf16.mxu0 %v1300
    %1405 = vmatpush1.bf16.msra.mxu0 %v1299
    %1406 = vmatprep.subr.bf16.mxu0 %v1302
    %1407 = vmatpush1.bf16.msra.mxu0 %v1301
    %1408 = vmatprep.subr.bf16.mxu0 %v1304
    %1409 = vmatpush1.bf16.msra.mxu0 %v1303
    %1410 = vmatprep.subr.bf16.mxu0 0
    %1411 = vmatpush1.bf16.msra.mxu0 0
    %1412 = vmatprep.subr.bf16.mxu0 0
    %1413 = vmatpush1.bf16.msra.mxu0 0
    %1414 = vmatprep.subr.bf16.mxu0 0
    %1415 = vmatpush1.bf16.msra.mxu0 0
    %1416 = vmatprep.subr.bf16.mxu0 0
    %1417 = vmatpush1.bf16.msra.mxu0 0
    %1418 = vmatprep.subr.bf16.mxu0 0
    %1419 = vmatpush1.bf16.msra.mxu0 0
    %1420 = vmatprep.subr.bf16.mxu0 0
    %1421 = vmatpush1.bf16.msra.mxu0 0
    %1422 = vmatprep.subr.bf16.mxu0 0
    %1423 = vmatpush1.bf16.msra.mxu0 0
    %1424 = vmatprep.subr.bf16.mxu0 0
    %1425 = vmatpush1.bf16.msra.mxu0 0
    %1426 = vmatprep.mubr.bf16.mxu0 0
    %1427 = vmatmul.mubr.bf16.gmra.mrb[0].mxu0 %v1052
    %v1428 = vpop.f32.mrb[0].mxu0
    %v1429 = vadd.f32 %v1388, %v1428
    %v1430 = vpop.f32.mrb[0].mxu0
    %v1431 = vadd.f32 %v1390, %v1430
    %v1432 = vpop.f32.mrb[0].mxu0
    %v1433 = vpop.f32.mrb[0].mxu0
    %1434 = vdwg.mxu0
    %v1435 = vmax.f32 %v1431, -20.0
    %v1436 = vmin.f32 %v1435, 2.0
    %v1437 = vmul.f32 %v1436, 1.442695
    %v1438 = vpow.pop %v1437
    %v1439 = vstv %s84
    %v1440 = vmul.f32 %v1438, %v1439
    %v1441 = vadd.f32 %v1429, %v1440
    %v1442 = vtanh.pop %v1441
    %s1443 = smul.f32 %s84, -0.5
    %s1444 = smul.f32 %s1443, %s84
    %v1445 = vstv %s1444
    %v1446 = vsub.f32 %v1445, %v1436
    %v1447 = vsub.f32 %v1446, 0.9189385
    %v1448 = vmul.f32 %v1442, %v1442
    %v1449 = vsub.f32 1.0, %v1448
    %v1450 = vadd.f32 %v1449, 1e-06
    %v1451 = vlog2.pop %v1450
    %v1452 = vmul.f32 %v1451, 0.6931472
    %v1453 = vsub.f32 %v1447, %v1452
    %1454 = vst [vmem:[#allocation12] sm:$0xff] %v1442
    %1455 = vst [vmem:[#allocation13] sm:$0xff] %v1453
    // Predicated region
    $region46: #{tpu_custom_call.1} parent=1 // pred_check
      _
    $region47: #{tpu_custom_call.1} parent=1 // pred_check_branch
      %1457 = sbr.rel (0) target = $region49
    $region48: #{tpu_custom_call.1} parent=1 // pred_region
      %s1459 = ssub.s32 128, 128
      %1460 = vsyncadd [#allocation6], %s1459
      %s1462 = sshll.u32 [#allocation12], 4
      %s1463 = int_to_ptr.vmem [resolvable:$true] %s1462
      %1465 = dma.vmem_to_hbm [thread:$0]  %s1463, 128, %s8, [#allocation6]
    $region49: #{tpu_custom_call.1} parent=1 // pred_fallthru
      _
    // Predicated region
    $region50: #{tpu_custom_call.1} parent=1 // pred_check
      _
    $region51: #{tpu_custom_call.1} parent=1 // pred_check_branch
      %1467 = sbr.rel (0) target = $region53
    $region52: #{tpu_custom_call.1} parent=1 // pred_region
      %s1469 = ssub.s32 128, 128
      %1470 = vsyncadd [#allocation14], %s1469
      %s1472 = sshll.u32 [#allocation13], 4
      %s1473 = int_to_ptr.vmem [resolvable:$true] %s1472
      %1475 = dma.vmem_to_hbm [thread:$0]  %s1473, 128, %s9, [#allocation14]
    $region53: #{tpu_custom_call.1} parent=1 // pred_fallthru
      _
    // Predicated region
    $region54: #{tpu_custom_call.1} parent=1 // pred_check
      _
    $region55: #{tpu_custom_call.1} parent=1 // pred_check_branch
      %1477 = sbr.rel (0) target = $region57
    $region56: #{tpu_custom_call.1} parent=1 // pred_region
      %1478 = dma.done [#allocation6], 128
    $region57: #{tpu_custom_call.1} parent=1 // pred_fallthru
      _
    // Predicated region
    $region58: #{tpu_custom_call.1} parent=1 // pred_check
      _
    $region59: #{tpu_custom_call.1} parent=1 // pred_check_branch
      %1480 = sbr.rel (0) target = $region61
    $region60: #{tpu_custom_call.1} parent=1 // pred_region
      %1481 = dma.done [#allocation14], 128
    $region61: #{tpu_custom_call.1} parent=1 // pred_fallthru
      _
    %1482 = vsyncpa [#allocation5], 1
    %1483 = vsyncpa [#allocation8], 1
    %1484 = vsyncpa [#allocation11], 1
    %1485 = vsyncpa [#allocation6], 1
    %1486 = vsyncpa [#allocation14], 1

</llo_original>
